<compile_context>
chip_gen: v7x
topology: tpu7x:2x2x1
jax: 0.10.0
libtpu: 0.0.40
codegen_flags: <defaults>
</compile_context>

<pallas_src>
import functools

import jax
import jax.numpy as jnp
from jax import lax
from jax.experimental import pallas as pl
from jax.experimental.pallas import tpu as pltpu


PARAM_ORDER = (
    "root_gate", "gate_A", "gate_B",
    "expert_A1", "expert_A2", "expert_B1", "expert_B2",
)
SUBLANE = 8
LANE = 128


def _round_up(n, m):
    return ((n + m - 1) // m) * m


# ----------------------------- kernel ---------------------------------------

def _softmax_cols(z):
    """Numerically stable softmax over axis 0 (per-net logit rows).

    Exact division for the normalisation: the kernel is nowhere near
    EUP-bound, and the approx reciprocal previously cost ~1e-3 of accuracy.
    """
    m = jnp.max(z, axis=0, keepdims=True)
    e = jnp.exp(z - m)
    return e / jnp.sum(e, axis=0, keepdims=True)


def hme_kernel(x_ref, w1_ref, b1_ref, w2_ref, b2_ref, out_ref, *,
               input_dim, num_experts, num_classes, seg_offs):
    """Batch-on-lanes HME forward for one batch tile.

    x_ref   : [D,  tb]   transposed input tile (batch on the 128-wide lanes)
    w1_ref  : [Hp, D]    all 7 first layers concatenated along rows (resident)
    b1_ref  : [Hp, 1]
    w2_ref  : [Tp, Hp]   block-diagonal second layers, rows 8-sublane aligned
    b2_ref  : [Tp, 1]
    out_ref : [C,  tb]   mixed class probabilities (transposed)

    NOTE: if the final batch tile is partial, the padding lanes carry
    stale/undefined data through exp() (possibly inf/NaN).  That is harmless
    because every op here is per-lane (softmax reduces over sublanes only)
    and Pallas discards out-of-bounds lanes on writeback; do NOT add any
    cross-lane (cross-batch) reduction to this kernel without masking.
    """
    D, E, C = input_dim, num_experts, num_classes
    x = x_ref[...]                                          # [D, tb]

    # ---- fused first layer of all 7 sub-nets -> [Hp, tb] hidden ----
    if D <= 8:
        # K=D is tiny: D broadcast FMAs on the VPU instead of a
        # 2/256-occupied MXU round trip.
        acc = w1_ref[:, 0:1] * x[0:1, :] + b1_ref[...]
        for d in range(1, D):
            acc = acc + w1_ref[:, d:d + 1] * x[d:d + 1, :]
    else:
        acc = jnp.dot(w1_ref[...], x,
                      preferred_element_type=jnp.float32,
                      precision=lax.Precision.HIGHEST) + b1_ref[...]
    h = jnp.maximum(acc, 0.0)                               # [Hp, tb]

    # ---- fused block-diagonal second layer -> [Tp, tb] logits slab ----
    logits = jnp.dot(w2_ref[...], h,
                     preferred_element_type=jnp.float32,
                     precision=lax.Precision.HIGHEST) + b2_ref[...]

    # ---- per-net softmaxes (segments start on 8-sublane boundaries) ----
    o = seg_offs
    root = _softmax_cols(logits[o[0]:o[0] + 2, :])          # [2, tb]
    gate_a = _softmax_cols(logits[o[1]:o[1] + E, :])        # [E, tb]
    gate_b = _softmax_cols(logits[o[2]:o[2] + E, :])
    pa1 = _softmax_cols(logits[o[3]:o[3] + C, :])           # [C, tb]
    pa2 = _softmax_cols(logits[o[4]:o[4] + C, :])
    pb1 = _softmax_cols(logits[o[5]:o[5] + C, :])
    pb2 = _softmax_cols(logits[o[6]:o[6] + C, :])

    # ---- hierarchical mixing (same op order as the PyTorch module) ----
    branch_a = gate_a[0:1, :] * pa1 + gate_a[1:2, :] * pa2
    branch_b = gate_b[0:1, :] * pb1 + gate_b[1:2, :] * pb2
    out_ref[...] = root[0:1, :] * branch_a + root[1:2, :] * branch_b


# ------------------------- parameter packing ---------------------------------

def pack_params(params):
    """Pack the 7 small MLPs into one fused, transposed, block-diagonal MLP.

    Returns (W1T [Hp, D], b1T [Hp, 1], W2T [Tp, Hp], b2T [Tp, 1], seg_offs)
    with Hp = 7*H rounded to a multiple of 8 and each output segment starting
    on an 8-sublane boundary so in-kernel slices need no sublane relayout.
    """
    D, H = params["root_gate"][0].shape
    n = len(PARAM_ORDER)
    out_dims = [params[name][2].shape[1] for name in PARAM_ORDER]

    Hp = _round_up(n * H, SUBLANE)
    seg_offs, Tp = [], 0
    for od in out_dims:
        seg_offs.append(Tp)
        Tp += _round_up(od, SUBLANE)

    W1T = jnp.zeros((Hp, D), jnp.float32)
    b1T = jnp.zeros((Hp, 1), jnp.float32)
    W2T = jnp.zeros((Tp, Hp), jnp.float32)
    b2T = jnp.zeros((Tp, 1), jnp.float32)

    for i, name in enumerate(PARAM_ORDER):
        w1_i, b1_i, w2_i, b2_i = params[name]   # [D,H],[1,H],[H,out],[1,out]
        r0, o0, oc = i * H, seg_offs[i], w2_i.shape[1]
        W1T = W1T.at[r0:r0 + H, :].set(w1_i.T)
        b1T = b1T.at[r0:r0 + H, 0].set(b1_i[0])
        W2T = W2T.at[o0:o0 + oc, r0:r0 + H].set(w2_i.T)
        b2T = b2T.at[o0:o0 + oc, 0].set(b2_i[0])
    return W1T, b1T, W2T, b2T, tuple(seg_offs)


# ----------------------------- wrapper ---------------------------------------

def _pick_tile(batch, tile_b):
    """Batch-tile (lane) width.

    Big tiles amortise the ~0.35us/grid-step overhead; the tile must be a
    multiple of 128 lanes (or the full batch) for unmasked lane-dense
    loads/stores; and we keep >=2 grid steps for large batches so a v7x
    megacore can shard the "parallel" axis across its 2 TensorCores.
    """
    if batch <= 256:
        return batch                          # single full-extent tile
    tb = min(tile_b, pl.cdiv(batch, 2))       # at least 2 grid steps
    return max(LANE, (tb // LANE) * LANE)


def hme_forward(x, params, *, tile_b=4096):
    """HME forward.  x: [B, D] float32 -> [B, num_classes] float32.

    params: dict name -> (w1 [D,H], b1 [1,H], w2 [H,out], b2 [1,out]).
    tile_b=4096 keeps per-tile VMEM (a few MiB incl. intermediates) well
    under the scoped limits of v5e/v6e/v7x; raise it (with vmem_limit_bytes)
    on v5e/v6e for even fewer grid steps.
    """
    B, D = x.shape
    E = params["gate_A"][2].shape[1]
    C = params["expert_A1"][2].shape[1]
    assert params["root_gate"][2].shape[1] == 2
    # The module's forward hardwires 2 experts per branch in the mixing.
    assert E >= 2 and params["gate_B"][2].shape[1] == E

    W1T, b1T, W2T, b2T, seg_offs = pack_params(params)
    Hp, Tp = W1T.shape[0], W2T.shape[0]

    tb = _pick_tile(B, tile_b)
    grid = (pl.cdiv(B, tb),)

    xT = x.T                                   # [D, B]: batch on lanes

    kern = functools.partial(
        hme_kernel, input_dim=D, num_experts=E, num_classes=C,
        seg_offs=seg_offs)

    flops = 2 * B * (D * Hp + Hp * Tp) + 30 * B * Tp
    transcendentals = B * (6 + 4 * C)                      # exps
    bytes_accessed = 4 * (B * (D + C) + Hp * (D + Tp + 2) + Tp)

    outT = pl.pallas_call(
        kern,
        out_shape=jax.ShapeDtypeStruct((C, B), jnp.float32),
        grid=grid,
        in_specs=[
            pl.BlockSpec((D, tb), lambda i: (0, i)),    # xT: streamed over batch
            pl.BlockSpec((Hp, D), lambda i: (0, 0)),    # W1T: resident in VMEM
            pl.BlockSpec((Hp, 1), lambda i: (0, 0)),
            pl.BlockSpec((Tp, Hp), lambda i: (0, 0)),   # W2T block-diag: resident
            pl.BlockSpec((Tp, 1), lambda i: (0, 0)),
        ],
        out_specs=pl.BlockSpec((C, tb), lambda i: (0, i)),
        compiler_params=pltpu.CompilerParams(
            dimension_semantics=("parallel",),
            vmem_limit_bytes=32 * 1024 * 1024),
        cost_estimate=pl.CostEstimate(
            flops=flops, transcendentals=transcendentals,
            bytes_accessed=bytes_accessed),
    )(xT, W1T, b1T, W2T, b2T)

    return outT.T                              # back to [B, C]


# ------------------------ deterministic parameter init -----------------------

def _linear_params(key, fan_in, fan_out):
    """PyTorch-style uniform(-1/sqrt(fan_in), 1/sqrt(fan_in)) init.

    Weight stored transposed to [in, out]; bias as [1, out].
    """
    kw, kb = jax.random.split(key)
    bound = 1.0 / jnp.sqrt(float(fan_in))
    w = jax.random.uniform(kw, (fan_in, fan_out), jnp.float32, -bound, bound)
    b = jax.random.uniform(kb, (1, fan_out), jnp.float32, -bound, bound)
    return w, b


def init_params(key, input_dim=2, hidden_dim=16,
                num_experts_per_branch=2, num_classes=2):
    out_dims = {
        "root_gate": 2,
        "gate_A": num_experts_per_branch,
        "gate_B": num_experts_per_branch,
        "expert_A1": num_classes,
        "expert_A2": num_classes,
        "expert_B1": num_classes,
        "expert_B2": num_classes,
    }
    params = {}
    keys = jax.random.split(key, len(PARAM_ORDER))
    for name, k in zip(PARAM_ORDER, keys):
        k1, k2 = jax.random.split(k)
        w1, b1 = _linear_params(k1, input_dim, hidden_dim)
        w2, b2 = _linear_params(k2, hidden_dim, out_dims[name])
        params[name] = (w1, b1, w2, b2)
    return params


# ----------------------------- pure-JAX reference -----------------------------

def _ref_mlp(x, p):
    w1, b1, w2, b2 = p
    h = jnp.maximum(
        jnp.dot(x, w1, precision=lax.Precision.HIGHEST) + b1, 0.0)
    return jnp.dot(h, w2, precision=lax.Precision.HIGHEST) + b2


def hme_ref(x, params):
    sm = lambda z: jax.nn.softmax(z, axis=1)
    root_w = sm(_ref_mlp(x, params["root_gate"]))
    gate_a = sm(_ref_mlp(x, params["gate_A"]))
    gate_b = sm(_ref_mlp(x, params["gate_B"]))
    pa1 = sm(_ref_mlp(x, params["expert_A1"]))
    pa2 = sm(_ref_mlp(x, params["expert_A2"]))
    pb1 = sm(_ref_mlp(x, params["expert_B1"]))
    pb2 = sm(_ref_mlp(x, params["expert_B2"]))
    branch_a = gate_a[:, 0:1] * pa1 + gate_a[:, 1:2] * pa2
    branch_b = gate_b[:, 0:1] * pb1 + gate_b[:, 1:2] * pb2
    return root_w[:, 0:1] * branch_a + root_w[:, 1:2] * branch_b


# ----------------------------------- main ------------------------------------

if __name__ == "__main__":
    input_dim, hidden_dim = 2, 16
    num_experts_per_branch, num_classes = 2, 2

    root = jax.random.PRNGKey(0)
    kx, kp = jax.random.split(root)
    params = init_params(kp, input_dim, hidden_dim,
                         num_experts_per_branch, num_classes)

    # Small single-tile check.
    x = jax.random.normal(kx, (8, input_dim), jnp.float32)
    out = jax.block_until_ready(hme_forward(x, params))
    ref = hme_ref(x, params)
    assert out.shape == (8, num_classes)
    assert jnp.allclose(out, ref, atol=1e-3, rtol=1e-3), (out, ref)
    assert jnp.allclose(jnp.sum(out, axis=1), 1.0, atol=1e-3)

    # Multi-tile batch grid (4 x 512-lane tiles): exercises resident-weight
    # pipelining and the "parallel" batch axis (megacore sharding on v7x).
    x_big = jax.random.normal(jax.random.PRNGKey(1), (2048, input_dim),
                              jnp.float32)
    out_big = jax.block_until_ready(hme_forward(x_big, params, tile_b=512))
    ref_big = hme_ref(x_big, params)
    assert jnp.allclose(out_big, ref_big, atol=1e-3, rtol=1e-3)

    # Ragged final tile (B not a multiple of the lane-tile width).
    x_rag = jax.random.normal(jax.random.PRNGKey(2), (1000, input_dim),
                              jnp.float32)
    out_rag = jax.block_until_ready(hme_forward(x_rag, params, tile_b=512))
    ref_rag = hme_ref(x_rag, params)
    assert jnp.allclose(out_rag, ref_rag, atol=1e-3, rtol=1e-3)

    print("KERNEL_OK")
</pallas_src>

<mosaic_0001>
module attributes {stable_mosaic.version = 11 : i64} {
  func.func @hme_kernel(%arg0: i32, %arg1: memref<2x8xf32, #tpu.memory_space<vmem>>, %arg2: memref<112x2xf32, #tpu.memory_space<vmem>>, %arg3: memref<112x1xf32, #tpu.memory_space<vmem>>, %arg4: memref<56x112xf32, #tpu.memory_space<vmem>>, %arg5: memref<56x1xf32, #tpu.memory_space<vmem>>, %arg6: memref<2x8xf32, #tpu.memory_space<vmem>>) attributes {dimension_semantics = [#tpu.dimension_semantics<parallel>], iteration_bounds = array<i64: 1>, scalar_prefetch = 0 : i64, scratch_operands = 0 : i64, tpu.core_type = #tpu.core_type<tc>, window_params = [{transform_indices = @transform_0, window_bounds = array<i64: 2, 8>}, {pipeline_mode = #tpu.pipeline_mode<synchronous>, transform_indices = @transform_1, window_bounds = array<i64: 112, 2>}, {pipeline_mode = #tpu.pipeline_mode<synchronous>, transform_indices = @transform_2, window_bounds = array<i64: 112, 1>}, {pipeline_mode = #tpu.pipeline_mode<synchronous>, transform_indices = @transform_3, window_bounds = array<i64: 56, 112>}, {pipeline_mode = #tpu.pipeline_mode<synchronous>, transform_indices = @transform_4, window_bounds = array<i64: 56, 1>}, {transform_indices = @transform_5, window_bounds = array<i64: 2, 8>}]} {
    %c0 = arith.constant 0 : index
    %c0_0 = arith.constant 0 : index
    %0 = vector.load %arg1[%c0, %c0_0] : memref<2x8xf32, #tpu.memory_space<vmem>>, vector<2x8xf32>
    %c0_1 = arith.constant 0 : index
    %c0_2 = arith.constant 0 : index
    %1 = vector.load %arg2[%c0_1, %c0_2] : memref<112x2xf32, #tpu.memory_space<vmem>>, vector<112x1xf32>
    %2 = vector.extract_strided_slice %0 {offsets = [0, 0], sizes = [1, 8], strides = [1, 1]} : vector<2x8xf32> to vector<1x8xf32>
    %3 = vector.broadcast %1 : vector<112x1xf32> to vector<112x8xf32>
    %4 = vector.broadcast %2 : vector<1x8xf32> to vector<112x8xf32>
    %5 = arith.mulf %3, %4 : vector<112x8xf32>
    %c0_3 = arith.constant 0 : index
    %c0_4 = arith.constant 0 : index
    %6 = vector.load %arg3[%c0_3, %c0_4] : memref<112x1xf32, #tpu.memory_space<vmem>>, vector<112x1xf32>
    %7 = vector.broadcast %6 : vector<112x1xf32> to vector<112x8xf32>
    %8 = arith.addf %5, %7 : vector<112x8xf32>
    %c0_5 = arith.constant 0 : index
    %c1 = arith.constant 1 : index
    %9 = vector.load %arg2[%c0_5, %c1] : memref<112x2xf32, #tpu.memory_space<vmem>>, vector<112x1xf32>
    %10 = vector.extract_strided_slice %0 {offsets = [1, 0], sizes = [1, 8], strides = [1, 1]} : vector<2x8xf32> to vector<1x8xf32>
    %11 = vector.broadcast %9 : vector<112x1xf32> to vector<112x8xf32>
    %12 = vector.broadcast %10 : vector<1x8xf32> to vector<112x8xf32>
    %13 = arith.mulf %11, %12 : vector<112x8xf32>
    %14 = arith.addf %8, %13 : vector<112x8xf32>
    %cst = arith.constant 0.000000e+00 : f32
    %15 = vector.broadcast %cst : f32 to vector<112x8xf32>
    %16 = arith.maximumf %14, %15 : vector<112x8xf32>
    %c0_6 = arith.constant 0 : index
    %c0_7 = arith.constant 0 : index
    %17 = vector.load %arg4[%c0_6, %c0_7] : memref<56x112xf32, #tpu.memory_space<vmem>>, vector<56x112xf32>
    %cst_8 = arith.constant dense<0.000000e+00> : vector<56x8xf32>
    %18 = tpu.matmul %17, %16, %cst_8 {dimension_numbers = #tpu.dot_dimension_numbers<[1], [0], [0], [1], [0, 0, 1, 1], [], []>, precision = #tpu.contract_precision<fp32>} : vector<56x112xf32>, vector<112x8xf32>, vector<56x8xf32> -> vector<56x8xf32>
    %c0_9 = arith.constant 0 : index
    %c0_10 = arith.constant 0 : index
    %19 = vector.load %arg5[%c0_9, %c0_10] : memref<56x1xf32, #tpu.memory_space<vmem>>, vector<56x1xf32>
    %20 = vector.broadcast %19 : vector<56x1xf32> to vector<56x8xf32>
    %21 = arith.addf %18, %20 : vector<56x8xf32>
    %22 = vector.extract_strided_slice %21 {offsets = [0, 0], sizes = [2, 8], strides = [1, 1]} : vector<56x8xf32> to vector<2x8xf32>
    %cst_11 = arith.constant dense<0xFF800000> : vector<8xf32>
    %23 = vector.multi_reduction <maximumf>, %22, %cst_11 [0] : vector<2x8xf32> to vector<8xf32>
    %24 = vector.shape_cast %23 : vector<8xf32> to vector<1x8xf32>
    %25 = vector.broadcast %24 : vector<1x8xf32> to vector<2x8xf32>
    %26 = arith.subf %22, %25 : vector<2x8xf32>
    %27 = math.exp %26 : vector<2x8xf32>
    %cst_12 = arith.constant dense<0.000000e+00> : vector<8xf32>
    %28 = vector.multi_reduction <add>, %27, %cst_12 [0] : vector<2x8xf32> to vector<8xf32>
    %29 = vector.shape_cast %28 : vector<8xf32> to vector<1x8xf32>
    %30 = vector.broadcast %29 : vector<1x8xf32> to vector<2x8xf32>
    %31 = arith.divf %27, %30 : vector<2x8xf32>
    %32 = vector.extract_strided_slice %21 {offsets = [8, 0], sizes = [2, 8], strides = [1, 1]} : vector<56x8xf32> to vector<2x8xf32>
    %cst_13 = arith.constant dense<0xFF800000> : vector<8xf32>
    %33 = vector.multi_reduction <maximumf>, %32, %cst_13 [0] : vector<2x8xf32> to vector<8xf32>
    %34 = vector.shape_cast %33 : vector<8xf32> to vector<1x8xf32>
    %35 = vector.broadcast %34 : vector<1x8xf32> to vector<2x8xf32>
    %36 = arith.subf %32, %35 : vector<2x8xf32>
    %37 = math.exp %36 : vector<2x8xf32>
    %cst_14 = arith.constant dense<0.000000e+00> : vector<8xf32>
    %38 = vector.multi_reduction <add>, %37, %cst_14 [0] : vector<2x8xf32> to vector<8xf32>
    %39 = vector.shape_cast %38 : vector<8xf32> to vector<1x8xf32>
    %40 = vector.broadcast %39 : vector<1x8xf32> to vector<2x8xf32>
    %41 = arith.divf %37, %40 : vector<2x8xf32>
    %42 = vector.extract_strided_slice %21 {offsets = [16, 0], sizes = [2, 8], strides = [1, 1]} : vector<56x8xf32> to vector<2x8xf32>
    %cst_15 = arith.constant dense<0xFF800000> : vector<8xf32>
    %43 = vector.multi_reduction <maximumf>, %42, %cst_15 [0] : vector<2x8xf32> to vector<8xf32>
    %44 = vector.shape_cast %43 : vector<8xf32> to vector<1x8xf32>
    %45 = vector.broadcast %44 : vector<1x8xf32> to vector<2x8xf32>
    %46 = arith.subf %42, %45 : vector<2x8xf32>
    %47 = math.exp %46 : vector<2x8xf32>
    %cst_16 = arith.constant dense<0.000000e+00> : vector<8xf32>
    %48 = vector.multi_reduction <add>, %47, %cst_16 [0] : vector<2x8xf32> to vector<8xf32>
    %49 = vector.shape_cast %48 : vector<8xf32> to vector<1x8xf32>
    %50 = vector.broadcast %49 : vector<1x8xf32> to vector<2x8xf32>
    %51 = arith.divf %47, %50 : vector<2x8xf32>
    %52 = vector.extract_strided_slice %21 {offsets = [24, 0], sizes = [2, 8], strides = [1, 1]} : vector<56x8xf32> to vector<2x8xf32>
    %cst_17 = arith.constant dense<0xFF800000> : vector<8xf32>
    %53 = vector.multi_reduction <maximumf>, %52, %cst_17 [0] : vector<2x8xf32> to vector<8xf32>
    %54 = vector.shape_cast %53 : vector<8xf32> to vector<1x8xf32>
    %55 = vector.broadcast %54 : vector<1x8xf32> to vector<2x8xf32>
    %56 = arith.subf %52, %55 : vector<2x8xf32>
    %57 = math.exp %56 : vector<2x8xf32>
    %cst_18 = arith.constant dense<0.000000e+00> : vector<8xf32>
    %58 = vector.multi_reduction <add>, %57, %cst_18 [0] : vector<2x8xf32> to vector<8xf32>
    %59 = vector.shape_cast %58 : vector<8xf32> to vector<1x8xf32>
    %60 = vector.broadcast %59 : vector<1x8xf32> to vector<2x8xf32>
    %61 = arith.divf %57, %60 : vector<2x8xf32>
    %62 = vector.extract_strided_slice %21 {offsets = [32, 0], sizes = [2, 8], strides = [1, 1]} : vector<56x8xf32> to vector<2x8xf32>
    %cst_19 = arith.constant dense<0xFF800000> : vector<8xf32>
    %63 = vector.multi_reduction <maximumf>, %62, %cst_19 [0] : vector<2x8xf32> to vector<8xf32>
    %64 = vector.shape_cast %63 : vector<8xf32> to vector<1x8xf32>
    %65 = vector.broadcast %64 : vector<1x8xf32> to vector<2x8xf32>
    %66 = arith.subf %62, %65 : vector<2x8xf32>
    %67 = math.exp %66 : vector<2x8xf32>
    %cst_20 = arith.constant dense<0.000000e+00> : vector<8xf32>
    %68 = vector.multi_reduction <add>, %67, %cst_20 [0] : vector<2x8xf32> to vector<8xf32>
    %69 = vector.shape_cast %68 : vector<8xf32> to vector<1x8xf32>
    %70 = vector.broadcast %69 : vector<1x8xf32> to vector<2x8xf32>
    %71 = arith.divf %67, %70 : vector<2x8xf32>
    %72 = vector.extract_strided_slice %21 {offsets = [40, 0], sizes = [2, 8], strides = [1, 1]} : vector<56x8xf32> to vector<2x8xf32>
    %cst_21 = arith.constant dense<0xFF800000> : vector<8xf32>
    %73 = vector.multi_reduction <maximumf>, %72, %cst_21 [0] : vector<2x8xf32> to vector<8xf32>
    %74 = vector.shape_cast %73 : vector<8xf32> to vector<1x8xf32>
    %75 = vector.broadcast %74 : vector<1x8xf32> to vector<2x8xf32>
    %76 = arith.subf %72, %75 : vector<2x8xf32>
    %77 = math.exp %76 : vector<2x8xf32>
    %cst_22 = arith.constant dense<0.000000e+00> : vector<8xf32>
    %78 = vector.multi_reduction <add>, %77, %cst_22 [0] : vector<2x8xf32> to vector<8xf32>
    %79 = vector.shape_cast %78 : vector<8xf32> to vector<1x8xf32>
    %80 = vector.broadcast %79 : vector<1x8xf32> to vector<2x8xf32>
    %81 = arith.divf %77, %80 : vector<2x8xf32>
    %82 = vector.extract_strided_slice %21 {offsets = [48, 0], sizes = [2, 8], strides = [1, 1]} : vector<56x8xf32> to vector<2x8xf32>
    %cst_23 = arith.constant dense<0xFF800000> : vector<8xf32>
    %83 = vector.multi_reduction <maximumf>, %82, %cst_23 [0] : vector<2x8xf32> to vector<8xf32>
    %84 = vector.shape_cast %83 : vector<8xf32> to vector<1x8xf32>
    %85 = vector.broadcast %84 : vector<1x8xf32> to vector<2x8xf32>
    %86 = arith.subf %82, %85 : vector<2x8xf32>
    %87 = math.exp %86 : vector<2x8xf32>
    %cst_24 = arith.constant dense<0.000000e+00> : vector<8xf32>
    %88 = vector.multi_reduction <add>, %87, %cst_24 [0] : vector<2x8xf32> to vector<8xf32>
    %89 = vector.shape_cast %88 : vector<8xf32> to vector<1x8xf32>
    %90 = vector.broadcast %89 : vector<1x8xf32> to vector<2x8xf32>
    %91 = arith.divf %87, %90 : vector<2x8xf32>
    %92 = vector.extract_strided_slice %41 {offsets = [0, 0], sizes = [1, 8], strides = [1, 1]} : vector<2x8xf32> to vector<1x8xf32>
    %93 = vector.broadcast %92 : vector<1x8xf32> to vector<2x8xf32>
    %94 = arith.mulf %93, %61 : vector<2x8xf32>
    %95 = vector.extract_strided_slice %41 {offsets = [1, 0], sizes = [1, 8], strides = [1, 1]} : vector<2x8xf32> to vector<1x8xf32>
    %96 = vector.broadcast %95 : vector<1x8xf32> to vector<2x8xf32>
    %97 = arith.mulf %96, %71 : vector<2x8xf32>
    %98 = arith.addf %94, %97 : vector<2x8xf32>
    %99 = vector.extract_strided_slice %51 {offsets = [0, 0], sizes = [1, 8], strides = [1, 1]} : vector<2x8xf32> to vector<1x8xf32>
    %100 = vector.broadcast %99 : vector<1x8xf32> to vector<2x8xf32>
    %101 = arith.mulf %100, %81 : vector<2x8xf32>
    %102 = vector.extract_strided_slice %51 {offsets = [1, 0], sizes = [1, 8], strides = [1, 1]} : vector<2x8xf32> to vector<1x8xf32>
    %103 = vector.broadcast %102 : vector<1x8xf32> to vector<2x8xf32>
    %104 = arith.mulf %103, %91 : vector<2x8xf32>
    %105 = arith.addf %101, %104 : vector<2x8xf32>
    %106 = vector.extract_strided_slice %31 {offsets = [0, 0], sizes = [1, 8], strides = [1, 1]} : vector<2x8xf32> to vector<1x8xf32>
    %107 = vector.broadcast %106 : vector<1x8xf32> to vector<2x8xf32>
    %108 = arith.mulf %107, %98 : vector<2x8xf32>
    %109 = vector.extract_strided_slice %31 {offsets = [1, 0], sizes = [1, 8], strides = [1, 1]} : vector<2x8xf32> to vector<1x8xf32>
    %110 = vector.broadcast %109 : vector<1x8xf32> to vector<2x8xf32>
    %111 = arith.mulf %110, %105 : vector<2x8xf32>
    %112 = arith.addf %108, %111 : vector<2x8xf32>
    %c0_25 = arith.constant 0 : index
    %c0_26 = arith.constant 0 : index
    %113 = vector.load %arg6[%c0_25, %c0_26] : memref<2x8xf32, #tpu.memory_space<vmem>>, vector<2x8xf32>
    tpu.vector_store %arg6[%c0_25, %c0_26], %112 {strides = array<i32>} : memref<2x8xf32, #tpu.memory_space<vmem>>, vector<2x8xf32>,
    return
  }
  func.func @transform_0(%arg0: i32) -> (i32, i32) {
    %c0_i32 = arith.constant 0 : i32
    %c0_i32_0 = arith.constant 0 : i32
    return %c0_i32, %arg0 : i32, i32
  }
  func.func @transform_1(%arg0: i32) -> (i32, i32) {
    %c0_i32 = arith.constant 0 : i32
    %c0_i32_0 = arith.constant 0 : i32
    %c0_i32_1 = arith.constant 0 : i32
    return %c0_i32, %c0_i32_0 : i32, i32
  }
  func.func @transform_2(%arg0: i32) -> (i32, i32) {
    %c0_i32 = arith.constant 0 : i32
    %c0_i32_0 = arith.constant 0 : i32
    %c0_i32_1 = arith.constant 0 : i32
    return %c0_i32, %c0_i32_0 : i32, i32
  }
  func.func @transform_3(%arg0: i32) -> (i32, i32) {
    %c0_i32 = arith.constant 0 : i32
    %c0_i32_0 = arith.constant 0 : i32
    %c0_i32_1 = arith.constant 0 : i32
    return %c0_i32, %c0_i32_0 : i32, i32
  }
  func.func @transform_4(%arg0: i32) -> (i32, i32) {
    %c0_i32 = arith.constant 0 : i32
    %c0_i32_0 = arith.constant 0 : i32
    %c0_i32_1 = arith.constant 0 : i32
    return %c0_i32, %c0_i32_0 : i32, i32
  }
  func.func @transform_5(%arg0: i32) -> (i32, i32) {
    %c0_i32 = arith.constant 0 : i32
    %c0_i32_0 = arith.constant 0 : i32
    return %c0_i32, %arg0 : i32, i32
  }
}

</mosaic_0001>

<llo_original>
// kernel: tpu_custom_call.1
$region0: #{tpu_custom_call.1}
  #allocation0 [shape = 'u32[]', space=smem, size = 0x4, offset = 0x4, fixed_abs, tag = 'smem constant byte address 0x4 - core index']
  #allocation1 [shape = 'u32[144,128]{1,0:T(1,128)}', space=vmem, size = 0x12000, scoped, tag = 'internal scratch']
  %s0 = inlined_call_operand.vmem [shape: f32[2,8], index: 0, kind: input, shape index: {}]
  %s1 = inlined_call_operand.vmem [shape: f32[112,2], index: 1, kind: input, shape index: {}]
  %s2 = inlined_call_operand.vmem [shape: f32[112,1], index: 2, kind: input, shape index: {}]
  %s3 = inlined_call_operand.vmem [shape: f32[56,112], index: 3, kind: input, shape index: {}]
  %s4 = inlined_call_operand.vmem [shape: f32[56,1], index: 4, kind: input, shape index: {}]
  %s5 = inlined_call_operand.hbm [shape: f32[2,8], index: 5, kind: output, shape index: {}]
  %s6 = sld [smem:[#allocation0]]
  $region30: #{tpu_custom_call.1} parent=0
    _
  %s8 = ssub.s32 1, %s6
  %s9 = scalar_select 0, %s8, %s6
  $region1: #{tpu_custom_call.1} parent=0
    #allocation2 [shape = 'u8[1024]{0}', space=vmem, size = 0x400, scoped, tag = 'output window, operand 0, single buffered']
    #allocation3 [shape = 's32[1]{0}', space=sflag, size = 0x4, scoped, tag = 'scoped memory for tpu_custom_call.1']
    %10 = vsyncpa [#allocation3], 0
    // Predicated region
    $region2: #{tpu_custom_call.1} parent=1 // pred_check
      _
    $region3: #{tpu_custom_call.1} parent=1 // pred_check_branch
      %12 = sbr.rel (0) target = $region5
    $region4: #{tpu_custom_call.1} parent=1 // pred_region
      _
    $region5: #{tpu_custom_call.1} parent=1 // pred_fallthru
      _
    // Predicated region
    $region6: #{tpu_custom_call.1} parent=1 // pred_check
      _
    $region7: #{tpu_custom_call.1} parent=1 // pred_check_branch
      %14 = sbr.rel (0) target = $region9
    $region8: #{tpu_custom_call.1} parent=1 // pred_region
      _
    $region9: #{tpu_custom_call.1} parent=1 // pred_fallthru
      _
    // Predicated region
    $region10: #{tpu_custom_call.1} parent=1 // pred_check
      _
    $region11: #{tpu_custom_call.1} parent=1 // pred_check_branch
      %16 = sbr.rel (0) target = $region13
    $region12: #{tpu_custom_call.1} parent=1 // pred_region
      _
    $region13: #{tpu_custom_call.1} parent=1 // pred_fallthru
      _
    // Predicated region
    $region14: #{tpu_custom_call.1} parent=1 // pred_check
      _
    $region15: #{tpu_custom_call.1} parent=1 // pred_check_branch
      %18 = sbr.rel (0) target = $region17
    $region16: #{tpu_custom_call.1} parent=1 // pred_region
      _
    $region17: #{tpu_custom_call.1} parent=1 // pred_fallthru
      _
    // Predicated region
    $region18: #{tpu_custom_call.1} parent=1 // pred_check
      _
    $region19: #{tpu_custom_call.1} parent=1 // pred_check_branch
      %20 = sbr.rel (0) target = $region21
    $region20: #{tpu_custom_call.1} parent=1 // pred_region
      _
    $region21: #{tpu_custom_call.1} parent=1 // pred_fallthru
      _
    %v21 = vld [vmem:[%s0] sm:$0x3]
    %v22 = vld [vmem:[%s1] sm:$0xff]
    %v23 = vld [vmem:[%s1 + $0x8] sm:$0xff]
    %v24 = vld [vmem:[%s1 + $0x10] sm:$0xff]
    %v25 = vld [vmem:[%s1 + $0x18] sm:$0xff]
    %v26 = vld [vmem:[%s1 + $0x20] sm:$0xff]
    %v27 = vld [vmem:[%s1 + $0x28] sm:$0xff]
    %v28 = vld [vmem:[%s1 + $0x30] sm:$0xff]
    %v29 = vld [vmem:[%s1 + $0x38] sm:$0xff]
    %v30 = vld [vmem:[%s1 + $0x40] sm:$0xff]
    %v31 = vld [vmem:[%s1 + $0x48] sm:$0xff]
    %v32 = vld [vmem:[%s1 + $0x50] sm:$0xff]
    %v33 = vld [vmem:[%s1 + $0x58] sm:$0xff]
    %v34 = vld [vmem:[%s1 + $0x60] sm:$0xff]
    %v35 = vld [vmem:[%s1 + $0x68] sm:$0xff]
    %37 = vset.pattern.permute.xlu0 0
    %38 = vperm.xlu0 %37, %v22
    %v39 = vpop.permute.xlu0 %38
    %42 = vset.pattern.permute.xlu0 0
    %43 = vperm.xlu0 %42, %v23
    %v44 = vpop.permute.xlu0 %43
    %47 = vset.pattern.permute.xlu0 0
    %48 = vperm.xlu0 %47, %v24
    %v49 = vpop.permute.xlu0 %48
    %52 = vset.pattern.permute.xlu0 0
    %53 = vperm.xlu0 %52, %v25
    %v54 = vpop.permute.xlu0 %53
    %57 = vset.pattern.permute.xlu0 0
    %58 = vperm.xlu0 %57, %v26
    %v59 = vpop.permute.xlu0 %58
    %62 = vset.pattern.permute.xlu0 0
    %63 = vperm.xlu0 %62, %v27
    %v64 = vpop.permute.xlu0 %63
    %67 = vset.pattern.permute.xlu0 0
    %68 = vperm.xlu0 %67, %v28
    %v69 = vpop.permute.xlu0 %68
    %72 = vset.pattern.permute.xlu0 0
    %73 = vperm.xlu0 %72, %v29
    %v74 = vpop.permute.xlu0 %73
    %77 = vset.pattern.permute.xlu0 0
    %78 = vperm.xlu0 %77, %v30
    %v79 = vpop.permute.xlu0 %78
    %82 = vset.pattern.permute.xlu0 0
    %83 = vperm.xlu0 %82, %v31
    %v84 = vpop.permute.xlu0 %83
    %87 = vset.pattern.permute.xlu0 0
    %88 = vperm.xlu0 %87, %v32
    %v89 = vpop.permute.xlu0 %88
    %92 = vset.pattern.permute.xlu0 0
    %93 = vperm.xlu0 %92, %v33
    %v94 = vpop.permute.xlu0 %93
    %97 = vset.pattern.permute.xlu0 0
    %98 = vperm.xlu0 %97, %v34
    %v99 = vpop.permute.xlu0 %98
    %102 = vset.pattern.permute.xlu0 0
    %103 = vperm.xlu0 %102, %v35
    %v104 = vpop.permute.xlu0 %103
    %v106 = vlaneseq
    %v107 = vshrl.u32 %v106, 7
    %v108 = vsub.s32 0, %v107
    %v109 = vrot.slane %v21, %v108
    %v110 = vmul.f32 %v39, %v109
    %v111 = vmul.f32 %v44, %v109
    %v112 = vmul.f32 %v49, %v109
    %v113 = vmul.f32 %v54, %v109
    %v114 = vmul.f32 %v59, %v109
    %v115 = vmul.f32 %v64, %v109
    %v116 = vmul.f32 %v69, %v109
    %v117 = vmul.f32 %v74, %v109
    %v118 = vmul.f32 %v79, %v109
    %v119 = vmul.f32 %v84, %v109
    %v120 = vmul.f32 %v89, %v109
    %v121 = vmul.f32 %v94, %v109
    %v122 = vmul.f32 %v99, %v109
    %v123 = vmul.f32 %v104, %v109
    %v124 = vld [vmem:[%s2] sm:$0xff]
    %v125 = vld [vmem:[%s2 + $0x8] sm:$0xff]
    %v126 = vld [vmem:[%s2 + $0x10] sm:$0xff]
    %v127 = vld [vmem:[%s2 + $0x18] sm:$0xff]
    %v128 = vld [vmem:[%s2 + $0x20] sm:$0xff]
    %v129 = vld [vmem:[%s2 + $0x28] sm:$0xff]
    %v130 = vld [vmem:[%s2 + $0x30] sm:$0xff]
    %v131 = vld [vmem:[%s2 + $0x38] sm:$0xff]
    %v132 = vld [vmem:[%s2 + $0x40] sm:$0xff]
    %v133 = vld [vmem:[%s2 + $0x48] sm:$0xff]
    %v134 = vld [vmem:[%s2 + $0x50] sm:$0xff]
    %v135 = vld [vmem:[%s2 + $0x58] sm:$0xff]
    %v136 = vld [vmem:[%s2 + $0x60] sm:$0xff]
    %v137 = vld [vmem:[%s2 + $0x68] sm:$0xff]
    %139 = vset.pattern.permute.xlu0 0
    %140 = vperm.xlu0 %139, %v124
    %v141 = vpop.permute.xlu0 %140
    %144 = vset.pattern.permute.xlu0 0
    %145 = vperm.xlu0 %144, %v125
    %v146 = vpop.permute.xlu0 %145
    %149 = vset.pattern.permute.xlu0 0
    %150 = vperm.xlu0 %149, %v126
    %v151 = vpop.permute.xlu0 %150
    %154 = vset.pattern.permute.xlu0 0
    %155 = vperm.xlu0 %154, %v127
    %v156 = vpop.permute.xlu0 %155
    %159 = vset.pattern.permute.xlu0 0
    %160 = vperm.xlu0 %159, %v128
    %v161 = vpop.permute.xlu0 %160
    %164 = vset.pattern.permute.xlu0 0
    %165 = vperm.xlu0 %164, %v129
    %v166 = vpop.permute.xlu0 %165
    %169 = vset.pattern.permute.xlu0 0
    %170 = vperm.xlu0 %169, %v130
    %v171 = vpop.permute.xlu0 %170
    %174 = vset.pattern.permute.xlu0 0
    %175 = vperm.xlu0 %174, %v131
    %v176 = vpop.permute.xlu0 %175
    %179 = vset.pattern.permute.xlu0 0
    %180 = vperm.xlu0 %179, %v132
    %v181 = vpop.permute.xlu0 %180
    %184 = vset.pattern.permute.xlu0 0
    %185 = vperm.xlu0 %184, %v133
    %v186 = vpop.permute.xlu0 %185
    %189 = vset.pattern.permute.xlu0 0
    %190 = vperm.xlu0 %189, %v134
    %v191 = vpop.permute.xlu0 %190
    %194 = vset.pattern.permute.xlu0 0
    %195 = vperm.xlu0 %194, %v135
    %v196 = vpop.permute.xlu0 %195
    %199 = vset.pattern.permute.xlu0 0
    %200 = vperm.xlu0 %199, %v136
    %v201 = vpop.permute.xlu0 %200
    %204 = vset.pattern.permute.xlu0 0
    %205 = vperm.xlu0 %204, %v137
    %v206 = vpop.permute.xlu0 %205
    %v208 = vadd.f32 %v110, %v141
    %v209 = vadd.f32 %v111, %v146
    %v210 = vadd.f32 %v112, %v151
    %v211 = vadd.f32 %v113, %v156
    %v212 = vadd.f32 %v114, %v161
    %v213 = vadd.f32 %v115, %v166
    %v214 = vadd.f32 %v116, %v171
    %v215 = vadd.f32 %v117, %v176
    %v216 = vadd.f32 %v118, %v181
    %v217 = vadd.f32 %v119, %v186
    %v218 = vadd.f32 %v120, %v191
    %v219 = vadd.f32 %v121, %v196
    %v220 = vadd.f32 %v122, %v201
    %v221 = vadd.f32 %v123, %v206
    %222 = vset.pattern.permute.xlu0 1
    %223 = vperm.xlu0 %222, %v22
    %v224 = vpop.permute.xlu0 %223
    %226 = vset.pattern.permute.xlu0 1
    %227 = vperm.xlu0 %226, %v23
    %v228 = vpop.permute.xlu0 %227
    %230 = vset.pattern.permute.xlu0 1
    %231 = vperm.xlu0 %230, %v24
    %v232 = vpop.permute.xlu0 %231
    %234 = vset.pattern.permute.xlu0 1
    %235 = vperm.xlu0 %234, %v25
    %v236 = vpop.permute.xlu0 %235
    %238 = vset.pattern.permute.xlu0 1
    %239 = vperm.xlu0 %238, %v26
    %v240 = vpop.permute.xlu0 %239
    %242 = vset.pattern.permute.xlu0 1
    %243 = vperm.xlu0 %242, %v27
    %v244 = vpop.permute.xlu0 %243
    %246 = vset.pattern.permute.xlu0 1
    %247 = vperm.xlu0 %246, %v28
    %v248 = vpop.permute.xlu0 %247
    %250 = vset.pattern.permute.xlu0 1
    %251 = vperm.xlu0 %250, %v29
    %v252 = vpop.permute.xlu0 %251
    %254 = vset.pattern.permute.xlu0 1
    %255 = vperm.xlu0 %254, %v30
    %v256 = vpop.permute.xlu0 %255
    %258 = vset.pattern.permute.xlu0 1
    %259 = vperm.xlu0 %258, %v31
    %v260 = vpop.permute.xlu0 %259
    %262 = vset.pattern.permute.xlu0 1
    %263 = vperm.xlu0 %262, %v32
    %v264 = vpop.permute.xlu0 %263
    %266 = vset.pattern.permute.xlu0 1
    %267 = vperm.xlu0 %266, %v33
    %v268 = vpop.permute.xlu0 %267
    %270 = vset.pattern.permute.xlu0 1
    %271 = vperm.xlu0 %270, %v34
    %v272 = vpop.permute.xlu0 %271
    %274 = vset.pattern.permute.xlu0 1
    %275 = vperm.xlu0 %274, %v35
    %v276 = vpop.permute.xlu0 %275
    %v278 = vlaneseq
    %v279 = vshrl.u32 %v278, 7
    %v280 = vsub.s32 1, %v279
    %v281 = vrot.slane %v21, %v280
    %v282 = vmul.f32 %v224, %v281
    %v283 = vmul.f32 %v228, %v281
    %v284 = vmul.f32 %v232, %v281
    %v285 = vmul.f32 %v236, %v281
    %v286 = vmul.f32 %v240, %v281
    %v287 = vmul.f32 %v244, %v281
    %v288 = vmul.f32 %v248, %v281
    %v289 = vmul.f32 %v252, %v281
    %v290 = vmul.f32 %v256, %v281
    %v291 = vmul.f32 %v260, %v281
    %v292 = vmul.f32 %v264, %v281
    %v293 = vmul.f32 %v268, %v281
    %v294 = vmul.f32 %v272, %v281
    %v295 = vmul.f32 %v276, %v281
    %v296 = vadd.f32 %v208, %v282
    %v297 = vadd.f32 %v209, %v283
    %v298 = vadd.f32 %v210, %v284
    %v299 = vadd.f32 %v211, %v285
    %v300 = vadd.f32 %v212, %v286
    %v301 = vadd.f32 %v213, %v287
    %v302 = vadd.f32 %v214, %v288
    %v303 = vadd.f32 %v215, %v289
    %v304 = vadd.f32 %v216, %v290
    %v305 = vadd.f32 %v217, %v291
    %v306 = vadd.f32 %v218, %v292
    %v307 = vadd.f32 %v219, %v293
    %v308 = vadd.f32 %v220, %v294
    %v309 = vadd.f32 %v221, %v295
    %v310 = vmax.f32 %v296, 0.0
    %v311 = vmax.f32 %v297, 0.0
    %v312 = vmax.f32 %v298, 0.0
    %v313 = vmax.f32 %v299, 0.0
    %v314 = vmax.f32 %v300, 0.0
    %v315 = vmax.f32 %v301, 0.0
    %v316 = vmax.f32 %v302, 0.0
    %v317 = vmax.f32 %v303, 0.0
    %v318 = vmax.f32 %v304, 0.0
    %v319 = vmax.f32 %v305, 0.0
    %v320 = vmax.f32 %v306, 0.0
    %v321 = vmax.f32 %v307, 0.0
    %v322 = vmax.f32 %v308, 0.0
    %v323 = vmax.f32 %v309, 0.0
    %v324 = vld [vmem:[%s3] sm:$0xff]
    %v325 = vld [vmem:[%s3 + $0x8] sm:$0xff]
    %v326 = vld [vmem:[%s3 + $0x10] sm:$0xff]
    %v327 = vld [vmem:[%s3 + $0x18] sm:$0xff]
    %v328 = vld [vmem:[%s3 + $0x20] sm:$0xff]
    %v329 = vld [vmem:[%s3 + $0x28] sm:$0xff]
    %v330 = vld [vmem:[%s3 + $0x30] sm:$0xff]
    %v331 = vld [vmem:[%s4] sm:$0xff]
    %v332 = vld [vmem:[%s4 + $0x8] sm:$0xff]
    %v333 = vld [vmem:[%s4 + $0x10] sm:$0xff]
    %v334 = vld [vmem:[%s4 + $0x18] sm:$0xff]
    %v335 = vld [vmem:[%s4 + $0x20] sm:$0xff]
    %v336 = vld [vmem:[%s4 + $0x28] sm:$0xff]
    %v337 = vld [vmem:[%s4 + $0x30] sm:$0xff]
    %339 = vset.pattern.permute.xlu0 0
    %340 = vperm.xlu0 %339, %v331
    %v341 = vpop.permute.xlu0 %340
    %344 = vset.pattern.permute.xlu0 0
    %345 = vperm.xlu0 %344, %v332
    %v346 = vpop.permute.xlu0 %345
    %349 = vset.pattern.permute.xlu0 0
    %350 = vperm.xlu0 %349, %v333
    %v351 = vpop.permute.xlu0 %350
    %354 = vset.pattern.permute.xlu0 0
    %355 = vperm.xlu0 %354, %v334
    %v356 = vpop.permute.xlu0 %355
    %359 = vset.pattern.permute.xlu0 0
    %360 = vperm.xlu0 %359, %v335
    %v361 = vpop.permute.xlu0 %360
    %364 = vset.pattern.permute.xlu0 0
    %365 = vperm.xlu0 %364, %v336
    %v366 = vpop.permute.xlu0 %365
    %369 = vset.pattern.permute.xlu0 0
    %370 = vperm.xlu0 %369, %v337
    %v371 = vpop.permute.xlu0 %370
    %vm373 = vcmask 916480
    %v375 = vsel %vm373, %v324, 0
    %v378 = vsel %vm373, %v325, 0
    %v381 = vsel %vm373, %v326, 0
    %v384 = vsel %vm373, %v327, 0
    %v387 = vsel %vm373, %v328, 0
    %v390 = vsel %vm373, %v329, 0
    %v393 = vsel %vm373, %v330, 0
    %395 = vmatprep.subr.mxu0 0.0
    %v396 = vand.u32 %v310, 4294901760
    %397 = vmatpush1.msra.mxu0 %v396
    %398 = vmatprep.subr.mxu0 0.0
    %v399 = vand.u32 %v311, 4294901760
    %400 = vmatpush1.msra.mxu0 %v399
    %401 = vmatprep.subr.mxu0 0.0
    %v402 = vand.u32 %v312, 4294901760
    %403 = vmatpush1.msra.mxu0 %v402
    %404 = vmatprep.subr.mxu0 0.0
    %v405 = vand.u32 %v313, 4294901760
    %406 = vmatpush1.msra.mxu0 %v405
    %407 = vmatprep.subr.mxu0 0.0
    %v408 = vand.u32 %v314, 4294901760
    %409 = vmatpush1.msra.mxu0 %v408
    %410 = vmatprep.subr.mxu0 0.0
    %v411 = vand.u32 %v315, 4294901760
    %412 = vmatpush1.msra.mxu0 %v411
    %413 = vmatprep.subr.mxu0 0.0
    %v414 = vand.u32 %v316, 4294901760
    %415 = vmatpush1.msra.mxu0 %v414
    %416 = vmatprep.subr.mxu0 0.0
    %v417 = vand.u32 %v317, 4294901760
    %418 = vmatpush1.msra.mxu0 %v417
    %419 = vmatprep.subr.mxu0 0.0
    %v420 = vand.u32 %v318, 4294901760
    %421 = vmatpush1.msra.mxu0 %v420
    %422 = vmatprep.subr.mxu0 0.0
    %v423 = vand.u32 %v319, 4294901760
    %424 = vmatpush1.msra.mxu0 %v423
    %425 = vmatprep.subr.mxu0 0.0
    %v426 = vand.u32 %v320, 4294901760
    %427 = vmatpush1.msra.mxu0 %v426
    %428 = vmatprep.subr.mxu0 0.0
    %v429 = vand.u32 %v321, 4294901760
    %430 = vmatpush1.msra.mxu0 %v429
    %431 = vmatprep.subr.mxu0 0.0
    %v432 = vand.u32 %v322, 4294901760
    %433 = vmatpush1.msra.mxu0 %v432
    %434 = vmatprep.subr.mxu0 0.0
    %v435 = vand.u32 %v323, 4294901760
    %436 = vmatpush1.msra.mxu0 %v435
    %437 = vmatprep.subr.mxu0 0.0
    %438 = vmatpush1.msra.mxu0 0.0
    %439 = vmatprep.subr.mxu0 0.0
    %440 = vmatpush1.msra.mxu0 0.0
    %441 = vmatprep.subr.mxu0 0.0
    %442 = vmatpush1.msra.mxu0 0.0
    %443 = vmatprep.subr.mxu0 0.0
    %444 = vmatpush1.msra.mxu0 0.0
    %445 = vmatprep.subr.mxu0 0.0
    %446 = vmatpush1.msra.mxu0 0.0
    %447 = vmatprep.subr.mxu0 0.0
    %448 = vmatpush1.msra.mxu0 0.0
    %449 = vmatprep.subr.mxu0 0.0
    %450 = vmatpush1.msra.mxu0 0.0
    %451 = vmatprep.subr.mxu0 0.0
    %452 = vmatpush1.msra.mxu0 0.0
    %453 = vmatprep.subr.mxu0 0.0
    %454 = vmatpush1.msra.mxu0 0.0
    %455 = vmatprep.subr.mxu0 0.0
    %456 = vmatpush1.msra.mxu0 0.0
    %457 = vmatprep.subr.mxu0 0.0
    %458 = vmatpush1.msra.mxu0 0.0
    %459 = vmatprep.subr.mxu0 0.0
    %460 = vmatpush1.msra.mxu0 0.0
    %461 = vmatprep.subr.mxu0 0.0
    %462 = vmatpush1.msra.mxu0 0.0
    %463 = vmatprep.subr.mxu0 0.0
    %464 = vmatpush1.msra.mxu0 0.0
    %465 = vmatprep.subr.mxu0 0.0
    %466 = vmatpush1.msra.mxu0 0.0
    %467 = vmatprep.subr.mxu0 0.0
    %468 = vmatpush1.msra.mxu0 0.0
    %469 = vmatprep.subr.mxu0 0.0
    %470 = vmatpush1.msra.mxu0 0.0
    %471 = vmatprep.subr.mxu0 0.0
    %472 = vmatpush1.msra.mxu0 0.0
    %473 = vmatprep.mubr.f32.mxu0 0.0
    %v474 = vand.u32 %v375, 4294901760
    %v475 = vsub.f32 %v375, %v474
    %v476 = vand.u32 %v475, 4294901760
    %v477 = vsub.f32 %v475, %v476
    %v478 = vand.u32 %v477, 4294901760
    %479 = vmatmul.mubr.f32.gmra.mrb[0].mxu0 %v478
    %v480 = vpop.f32.mrb[0].mxu0
    %v481 = vadd.f32 %v341, %v480
    %v482 = vpop.f32.mrb[0].mxu0
    %483 = vmatprep.mubr.f32.mxu0 0.0
    %v484 = vand.u32 %v378, 4294901760
    %v485 = vsub.f32 %v378, %v484
    %v486 = vand.u32 %v485, 4294901760
    %v487 = vsub.f32 %v485, %v486
    %v488 = vand.u32 %v487, 4294901760
    %489 = vmatmul.mubr.f32.gmra.mrb[0].mxu0 %v488
    %v490 = vpop.f32.mrb[0].mxu0
    %v491 = vadd.f32 %v346, %v490
    %v492 = vpop.f32.mrb[0].mxu0
    %493 = vmatprep.mubr.f32.mxu0 0.0
    %v494 = vand.u32 %v381, 4294901760
    %v495 = vsub.f32 %v381, %v494
    %v496 = vand.u32 %v495, 4294901760
    %v497 = vsub.f32 %v495, %v496
    %v498 = vand.u32 %v497, 4294901760
    %499 = vmatmul.mubr.f32.gmra.mrb[0].mxu0 %v498
    %v500 = vpop.f32.mrb[0].mxu0
    %v501 = vadd.f32 %v351, %v500
    %v502 = vpop.f32.mrb[0].mxu0
    %503 = vmatprep.mubr.f32.mxu0 0.0
    %v504 = vand.u32 %v384, 4294901760
    %v505 = vsub.f32 %v384, %v504
    %v506 = vand.u32 %v505, 4294901760
    %v507 = vsub.f32 %v505, %v506
    %v508 = vand.u32 %v507, 4294901760
    %509 = vmatmul.mubr.f32.gmra.mrb[0].mxu0 %v508
    %v510 = vpop.f32.mrb[0].mxu0
    %v511 = vadd.f32 %v356, %v510
    %v512 = vpop.f32.mrb[0].mxu0
    %513 = vmatprep.mubr.f32.mxu0 0.0
    %v514 = vand.u32 %v387, 4294901760
    %v515 = vsub.f32 %v387, %v514
    %v516 = vand.u32 %v515, 4294901760
    %v517 = vsub.f32 %v515, %v516
    %v518 = vand.u32 %v517, 4294901760
    %519 = vmatmul.mubr.f32.gmra.mrb[0].mxu0 %v518
    %v520 = vpop.f32.mrb[0].mxu0
    %v521 = vadd.f32 %v361, %v520
    %v522 = vpop.f32.mrb[0].mxu0
    %523 = vmatprep.mubr.f32.mxu0 0.0
    %v524 = vand.u32 %v390, 4294901760
    %v525 = vsub.f32 %v390, %v524
    %v526 = vand.u32 %v525, 4294901760
    %v527 = vsub.f32 %v525, %v526
    %v528 = vand.u32 %v527, 4294901760
    %529 = vmatmul.mubr.f32.gmra.mrb[0].mxu0 %v528
    %v530 = vpop.f32.mrb[0].mxu0
    %v531 = vadd.f32 %v366, %v530
    %v532 = vpop.f32.mrb[0].mxu0
    %533 = vmatprep.mubr.f32.mxu0 0.0
    %v534 = vand.u32 %v393, 4294901760
    %v535 = vsub.f32 %v393, %v534
    %v536 = vand.u32 %v535, 4294901760
    %v537 = vsub.f32 %v535, %v536
    %v538 = vand.u32 %v537, 4294901760
    %539 = vmatmul.mubr.f32.gmra.mrb[0].mxu0 %v538
    %v540 = vpop.f32.mrb[0].mxu0
    %v541 = vadd.f32 %v371, %v540
    %v542 = vpop.f32.mrb[0].mxu0
    %543 = vdwg.mxu0
    %544 = vmatprep.subr.mxu0 0.0
    %v545 = vand.u32 %v310, 4294901760
    %v546 = vsub.f32 %v310, %v545
    %v547 = vand.u32 %v546, 4294901760
    %v548 = vsub.f32 %v546, %v547
    %v549 = vand.u32 %v548, 4294901760
    %550 = vmatpush1.msra.mxu0 %v549
    %551 = vmatprep.subr.mxu0 0.0
    %v552 = vand.u32 %v311, 4294901760
    %v553 = vsub.f32 %v311, %v552
    %v554 = vand.u32 %v553, 4294901760
    %v555 = vsub.f32 %v553, %v554
    %v556 = vand.u32 %v555, 4294901760
    %557 = vmatpush1.msra.mxu0 %v556
    %558 = vmatprep.subr.mxu0 0.0
    %v559 = vand.u32 %v312, 4294901760
    %v560 = vsub.f32 %v312, %v559
    %v561 = vand.u32 %v560, 4294901760
    %v562 = vsub.f32 %v560, %v561
    %v563 = vand.u32 %v562, 4294901760
    %564 = vmatpush1.msra.mxu0 %v563
    %565 = vmatprep.subr.mxu0 0.0
    %v566 = vand.u32 %v313, 4294901760
    %v567 = vsub.f32 %v313, %v566
    %v568 = vand.u32 %v567, 4294901760
    %v569 = vsub.f32 %v567, %v568
    %v570 = vand.u32 %v569, 4294901760
    %571 = vmatpush1.msra.mxu0 %v570
    %572 = vmatprep.subr.mxu0 0.0
    %v573 = vand.u32 %v314, 4294901760
    %v574 = vsub.f32 %v314, %v573
    %v575 = vand.u32 %v574, 4294901760
    %v576 = vsub.f32 %v574, %v575
    %v577 = vand.u32 %v576, 4294901760
    %578 = vmatpush1.msra.mxu0 %v577
    %579 = vmatprep.subr.mxu0 0.0
    %v580 = vand.u32 %v315, 4294901760
    %v581 = vsub.f32 %v315, %v580
    %v582 = vand.u32 %v581, 4294901760
    %v583 = vsub.f32 %v581, %v582
    %v584 = vand.u32 %v583, 4294901760
    %585 = vmatpush1.msra.mxu0 %v584
    %586 = vmatprep.subr.mxu0 0.0
    %v587 = vand.u32 %v316, 4294901760
    %v588 = vsub.f32 %v316, %v587
    %v589 = vand.u32 %v588, 4294901760
    %v590 = vsub.f32 %v588, %v589
    %v591 = vand.u32 %v590, 4294901760
    %592 = vmatpush1.msra.mxu0 %v591
    %593 = vmatprep.subr.mxu0 0.0
    %v594 = vand.u32 %v317, 4294901760
    %v595 = vsub.f32 %v317, %v594
    %v596 = vand.u32 %v595, 4294901760
    %v597 = vsub.f32 %v595, %v596
    %v598 = vand.u32 %v597, 4294901760
    %599 = vmatpush1.msra.mxu0 %v598
    %600 = vmatprep.subr.mxu0 0.0
    %v601 = vand.u32 %v318, 4294901760
    %v602 = vsub.f32 %v318, %v601
    %v603 = vand.u32 %v602, 4294901760
    %v604 = vsub.f32 %v602, %v603
    %v605 = vand.u32 %v604, 4294901760
    %606 = vmatpush1.msra.mxu0 %v605
    %607 = vmatprep.subr.mxu0 0.0
    %v608 = vand.u32 %v319, 4294901760
    %v609 = vsub.f32 %v319, %v608
    %v610 = vand.u32 %v609, 4294901760
    %v611 = vsub.f32 %v609, %v610
    %v612 = vand.u32 %v611, 4294901760
    %613 = vmatpush1.msra.mxu0 %v612
    %614 = vmatprep.subr.mxu0 0.0
    %v615 = vand.u32 %v320, 4294901760
    %v616 = vsub.f32 %v320, %v615
    %v617 = vand.u32 %v616, 4294901760
    %v618 = vsub.f32 %v616, %v617
    %v619 = vand.u32 %v618, 4294901760
    %620 = vmatpush1.msra.mxu0 %v619
    %621 = vmatprep.subr.mxu0 0.0
    %v622 = vand.u32 %v321, 4294901760
    %v623 = vsub.f32 %v321, %v622
    %v624 = vand.u32 %v623, 4294901760
    %v625 = vsub.f32 %v623, %v624
    %v626 = vand.u32 %v625, 4294901760
    %627 = vmatpush1.msra.mxu0 %v626
    %628 = vmatprep.subr.mxu0 0.0
    %v629 = vand.u32 %v322, 4294901760
    %v630 = vsub.f32 %v322, %v629
    %v631 = vand.u32 %v630, 4294901760
    %v632 = vsub.f32 %v630, %v631
    %v633 = vand.u32 %v632, 4294901760
    %634 = vmatpush1.msra.mxu0 %v633
    %635 = vmatprep.subr.mxu0 0.0
    %v636 = vand.u32 %v323, 4294901760
    %v637 = vsub.f32 %v323, %v636
    %v638 = vand.u32 %v637, 4294901760
    %v639 = vsub.f32 %v637, %v638
    %v640 = vand.u32 %v639, 4294901760
    %641 = vmatpush1.msra.mxu0 %v640
    %642 = vmatprep.subr.mxu0 0.0
    %643 = vmatpush1.msra.mxu0 0.0
    %644 = vmatprep.subr.mxu0 0.0
    %645 = vmatpush1.msra.mxu0 0.0
    %646 = vmatprep.subr.mxu0 0.0
    %647 = vmatpush1.msra.mxu0 0.0
    %648 = vmatprep.subr.mxu0 0.0
    %649 = vmatpush1.msra.mxu0 0.0
    %650 = vmatprep.subr.mxu0 0.0
    %651 = vmatpush1.msra.mxu0 0.0
    %652 = vmatprep.subr.mxu0 0.0
    %653 = vmatpush1.msra.mxu0 0.0
    %654 = vmatprep.subr.mxu0 0.0
    %655 = vmatpush1.msra.mxu0 0.0
    %656 = vmatprep.subr.mxu0 0.0
    %657 = vmatpush1.msra.mxu0 0.0
    %658 = vmatprep.subr.mxu0 0.0
    %659 = vmatpush1.msra.mxu0 0.0
    %660 = vmatprep.subr.mxu0 0.0
    %661 = vmatpush1.msra.mxu0 0.0
    %662 = vmatprep.subr.mxu0 0.0
    %663 = vmatpush1.msra.mxu0 0.0
    %664 = vmatprep.subr.mxu0 0.0
    %665 = vmatpush1.msra.mxu0 0.0
    %666 = vmatprep.subr.mxu0 0.0
    %667 = vmatpush1.msra.mxu0 0.0
    %668 = vmatprep.subr.mxu0 0.0
    %669 = vmatpush1.msra.mxu0 0.0
    %670 = vmatprep.subr.mxu0 0.0
    %671 = vmatpush1.msra.mxu0 0.0
    %672 = vmatprep.subr.mxu0 0.0
    %673 = vmatpush1.msra.mxu0 0.0
    %674 = vmatprep.subr.mxu0 0.0
    %675 = vmatpush1.msra.mxu0 0.0
    %676 = vmatprep.subr.mxu0 0.0
    %677 = vmatpush1.msra.mxu0 0.0
    %678 = vmatprep.mubr.f32.mxu0 0.0
    %v679 = vand.u32 %v375, 4294901760
    %680 = vmatmul.mubr.f32.gmra.mrb[0].mxu0 %v679
    %v681 = vpop.f32.mrb[0].mxu0
    %v682 = vadd.f32 %v481, %v681
    %v683 = vpop.f32.mrb[0].mxu0
    %684 = vmatprep.mubr.f32.mxu0 0.0
    %v685 = vand.u32 %v378, 4294901760
    %686 = vmatmul.mubr.f32.gmra.mrb[0].mxu0 %v685
    %v687 = vpop.f32.mrb[0].mxu0
    %v688 = vadd.f32 %v491, %v687
    %v689 = vpop.f32.mrb[0].mxu0
    %690 = vmatprep.mubr.f32.mxu0 0.0
    %v691 = vand.u32 %v381, 4294901760
    %692 = vmatmul.mubr.f32.gmra.mrb[0].mxu0 %v691
    %v693 = vpop.f32.mrb[0].mxu0
    %v694 = vadd.f32 %v501, %v693
    %v695 = vpop.f32.mrb[0].mxu0
    %696 = vmatprep.mubr.f32.mxu0 0.0
    %v697 = vand.u32 %v384, 4294901760
    %698 = vmatmul.mubr.f32.gmra.mrb[0].mxu0 %v697
    %v699 = vpop.f32.mrb[0].mxu0
    %v700 = vadd.f32 %v511, %v699
    %v701 = vpop.f32.mrb[0].mxu0
    %702 = vmatprep.mubr.f32.mxu0 0.0
    %v703 = vand.u32 %v387, 4294901760
    %704 = vmatmul.mubr.f32.gmra.mrb[0].mxu0 %v703
    %v705 = vpop.f32.mrb[0].mxu0
    %v706 = vadd.f32 %v521, %v705
    %v707 = vpop.f32.mrb[0].mxu0
    %708 = vmatprep.mubr.f32.mxu0 0.0
    %v709 = vand.u32 %v390, 4294901760
    %710 = vmatmul.mubr.f32.gmra.mrb[0].mxu0 %v709
    %v711 = vpop.f32.mrb[0].mxu0
    %v712 = vadd.f32 %v531, %v711
    %v713 = vpop.f32.mrb[0].mxu0
    %714 = vmatprep.mubr.f32.mxu0 0.0
    %v715 = vand.u32 %v393, 4294901760
    %716 = vmatmul.mubr.f32.gmra.mrb[0].mxu0 %v715
    %v717 = vpop.f32.mrb[0].mxu0
    %v718 = vadd.f32 %v541, %v717
    %v719 = vpop.f32.mrb[0].mxu0
    %720 = vdwg.mxu0
    %721 = vmatprep.subr.mxu0 0.0
    %v722 = vand.u32 %v310, 4294901760
    %v723 = vsub.f32 %v310, %v722
    %724 = vmatpush1.msra.mxu0 %v723
    %725 = vmatprep.subr.mxu0 0.0
    %v726 = vand.u32 %v311, 4294901760
    %v727 = vsub.f32 %v311, %v726
    %728 = vmatpush1.msra.mxu0 %v727
    %729 = vmatprep.subr.mxu0 0.0
    %v730 = vand.u32 %v312, 4294901760
    %v731 = vsub.f32 %v312, %v730
    %732 = vmatpush1.msra.mxu0 %v731
    %733 = vmatprep.subr.mxu0 0.0
    %v734 = vand.u32 %v313, 4294901760
    %v735 = vsub.f32 %v313, %v734
    %736 = vmatpush1.msra.mxu0 %v735
    %737 = vmatprep.subr.mxu0 0.0
    %v738 = vand.u32 %v314, 4294901760
    %v739 = vsub.f32 %v314, %v738
    %740 = vmatpush1.msra.mxu0 %v739
    %741 = vmatprep.subr.mxu0 0.0
    %v742 = vand.u32 %v315, 4294901760
    %v743 = vsub.f32 %v315, %v742
    %744 = vmatpush1.msra.mxu0 %v743
    %745 = vmatprep.subr.mxu0 0.0
    %v746 = vand.u32 %v316, 4294901760
    %v747 = vsub.f32 %v316, %v746
    %748 = vmatpush1.msra.mxu0 %v747
    %749 = vmatprep.subr.mxu0 0.0
    %v750 = vand.u32 %v317, 4294901760
    %v751 = vsub.f32 %v317, %v750
    %752 = vmatpush1.msra.mxu0 %v751
    %753 = vmatprep.subr.mxu0 0.0
    %v754 = vand.u32 %v318, 4294901760
    %v755 = vsub.f32 %v318, %v754
    %756 = vmatpush1.msra.mxu0 %v755
    %757 = vmatprep.subr.mxu0 0.0
    %v758 = vand.u32 %v319, 4294901760
    %v759 = vsub.f32 %v319, %v758
    %760 = vmatpush1.msra.mxu0 %v759
    %761 = vmatprep.subr.mxu0 0.0
    %v762 = vand.u32 %v320, 4294901760
    %v763 = vsub.f32 %v320, %v762
    %764 = vmatpush1.msra.mxu0 %v763
    %765 = vmatprep.subr.mxu0 0.0
    %v766 = vand.u32 %v321, 4294901760
    %v767 = vsub.f32 %v321, %v766
    %768 = vmatpush1.msra.mxu0 %v767
    %769 = vmatprep.subr.mxu0 0.0
    %v770 = vand.u32 %v322, 4294901760
    %v771 = vsub.f32 %v322, %v770
    %772 = vmatpush1.msra.mxu0 %v771
    %773 = vmatprep.subr.mxu0 0.0
    %v774 = vand.u32 %v323, 4294901760
    %v775 = vsub.f32 %v323, %v774
    %776 = vmatpush1.msra.mxu0 %v775
    %777 = vmatprep.subr.mxu0 0.0
    %778 = vmatpush1.msra.mxu0 0.0
    %779 = vmatprep.subr.mxu0 0.0
    %780 = vmatpush1.msra.mxu0 0.0
    %781 = vmatprep.subr.mxu0 0.0
    %782 = vmatpush1.msra.mxu0 0.0
    %783 = vmatprep.subr.mxu0 0.0
    %784 = vmatpush1.msra.mxu0 0.0
    %785 = vmatprep.subr.mxu0 0.0
    %786 = vmatpush1.msra.mxu0 0.0
    %787 = vmatprep.subr.mxu0 0.0
    %788 = vmatpush1.msra.mxu0 0.0
    %789 = vmatprep.subr.mxu0 0.0
    %790 = vmatpush1.msra.mxu0 0.0
    %791 = vmatprep.subr.mxu0 0.0
    %792 = vmatpush1.msra.mxu0 0.0
    %793 = vmatprep.subr.mxu0 0.0
    %794 = vmatpush1.msra.mxu0 0.0
    %795 = vmatprep.subr.mxu0 0.0
    %796 = vmatpush1.msra.mxu0 0.0
    %797 = vmatprep.subr.mxu0 0.0
    %798 = vmatpush1.msra.mxu0 0.0
    %799 = vmatprep.subr.mxu0 0.0
    %800 = vmatpush1.msra.mxu0 0.0
    %801 = vmatprep.subr.mxu0 0.0
    %802 = vmatpush1.msra.mxu0 0.0
    %803 = vmatprep.subr.mxu0 0.0
    %804 = vmatpush1.msra.mxu0 0.0
    %805 = vmatprep.subr.mxu0 0.0
    %806 = vmatpush1.msra.mxu0 0.0
    %807 = vmatprep.subr.mxu0 0.0
    %808 = vmatpush1.msra.mxu0 0.0
    %809 = vmatprep.subr.mxu0 0.0
    %810 = vmatpush1.msra.mxu0 0.0
    %811 = vmatprep.subr.mxu0 0.0
    %812 = vmatpush1.msra.mxu0 0.0
    %813 = vmatprep.mubr.f32.mxu0 0.0
    %v814 = vand.u32 %v375, 4294901760
    %v815 = vsub.f32 %v375, %v814
    %816 = vmatmul.mubr.f32.gmra.mrb[0].mxu0 %v815
    %v817 = vpop.f32.mrb[0].mxu0
    %v818 = vadd.f32 %v682, %v817
    %v819 = vpop.f32.mrb[0].mxu0
    %820 = vmatprep.mubr.f32.mxu0 0.0
    %v821 = vand.u32 %v378, 4294901760
    %v822 = vsub.f32 %v378, %v821
    %823 = vmatmul.mubr.f32.gmra.mrb[0].mxu0 %v822
    %v824 = vpop.f32.mrb[0].mxu0
    %v825 = vadd.f32 %v688, %v824
    %v826 = vpop.f32.mrb[0].mxu0
    %827 = vmatprep.mubr.f32.mxu0 0.0
    %v828 = vand.u32 %v381, 4294901760
    %v829 = vsub.f32 %v381, %v828
    %830 = vmatmul.mubr.f32.gmra.mrb[0].mxu0 %v829
    %v831 = vpop.f32.mrb[0].mxu0
    %v832 = vadd.f32 %v694, %v831
    %v833 = vpop.f32.mrb[0].mxu0
    %834 = vmatprep.mubr.f32.mxu0 0.0
    %v835 = vand.u32 %v384, 4294901760
    %v836 = vsub.f32 %v384, %v835
    %837 = vmatmul.mubr.f32.gmra.mrb[0].mxu0 %v836
    %v838 = vpop.f32.mrb[0].mxu0
    %v839 = vadd.f32 %v700, %v838
    %v840 = vpop.f32.mrb[0].mxu0
    %841 = vmatprep.mubr.f32.mxu0 0.0
    %v842 = vand.u32 %v387, 4294901760
    %v843 = vsub.f32 %v387, %v842
    %844 = vmatmul.mubr.f32.gmra.mrb[0].mxu0 %v843
    %v845 = vpop.f32.mrb[0].mxu0
    %v846 = vadd.f32 %v706, %v845
    %v847 = vpop.f32.mrb[0].mxu0
    %848 = vmatprep.mubr.f32.mxu0 0.0
    %v849 = vand.u32 %v390, 4294901760
    %v850 = vsub.f32 %v390, %v849
    %851 = vmatmul.mubr.f32.gmra.mrb[0].mxu0 %v850
    %v852 = vpop.f32.mrb[0].mxu0
    %v853 = vadd.f32 %v712, %v852
    %v854 = vpop.f32.mrb[0].mxu0
    %855 = vmatprep.mubr.f32.mxu0 0.0
    %v856 = vand.u32 %v393, 4294901760
    %v857 = vsub.f32 %v393, %v856
    %858 = vmatmul.mubr.f32.gmra.mrb[0].mxu0 %v857
    %v859 = vpop.f32.mrb[0].mxu0
    %v860 = vadd.f32 %v718, %v859
    %v861 = vpop.f32.mrb[0].mxu0
    %862 = vdwg.mxu0
    %863 = vmatprep.subr.mxu0 0.0
    %v864 = vand.u32 %v310, 4294901760
    %865 = vmatpush1.msra.mxu0 %v864
    %866 = vmatprep.subr.mxu0 0.0
    %v867 = vand.u32 %v311, 4294901760
    %868 = vmatpush1.msra.mxu0 %v867
    %869 = vmatprep.subr.mxu0 0.0
    %v870 = vand.u32 %v312, 4294901760
    %871 = vmatpush1.msra.mxu0 %v870
    %872 = vmatprep.subr.mxu0 0.0
    %v873 = vand.u32 %v313, 4294901760
    %874 = vmatpush1.msra.mxu0 %v873
    %875 = vmatprep.subr.mxu0 0.0
    %v876 = vand.u32 %v314, 4294901760
    %877 = vmatpush1.msra.mxu0 %v876
    %878 = vmatprep.subr.mxu0 0.0
    %v879 = vand.u32 %v315, 4294901760
    %880 = vmatpush1.msra.mxu0 %v879
    %881 = vmatprep.subr.mxu0 0.0
    %v882 = vand.u32 %v316, 4294901760
    %883 = vmatpush1.msra.mxu0 %v882
    %884 = vmatprep.subr.mxu0 0.0
    %v885 = vand.u32 %v317, 4294901760
    %886 = vmatpush1.msra.mxu0 %v885
    %887 = vmatprep.subr.mxu0 0.0
    %v888 = vand.u32 %v318, 4294901760
    %889 = vmatpush1.msra.mxu0 %v888
    %890 = vmatprep.subr.mxu0 0.0
    %v891 = vand.u32 %v319, 4294901760
    %892 = vmatpush1.msra.mxu0 %v891
    %893 = vmatprep.subr.mxu0 0.0
    %v894 = vand.u32 %v320, 4294901760
    %895 = vmatpush1.msra.mxu0 %v894
    %896 = vmatprep.subr.mxu0 0.0
    %v897 = vand.u32 %v321, 4294901760
    %898 = vmatpush1.msra.mxu0 %v897
    %899 = vmatprep.subr.mxu0 0.0
    %v900 = vand.u32 %v322, 4294901760
    %901 = vmatpush1.msra.mxu0 %v900
    %902 = vmatprep.subr.mxu0 0.0
    %v903 = vand.u32 %v323, 4294901760
    %904 = vmatpush1.msra.mxu0 %v903
    %905 = vmatprep.subr.mxu0 0.0
    %906 = vmatpush1.msra.mxu0 0.0
    %907 = vmatprep.subr.mxu0 0.0
    %908 = vmatpush1.msra.mxu0 0.0
    %909 = vmatprep.subr.mxu0 0.0
    %910 = vmatpush1.msra.mxu0 0.0
    %911 = vmatprep.subr.mxu0 0.0
    %912 = vmatpush1.msra.mxu0 0.0
    %913 = vmatprep.subr.mxu0 0.0
    %914 = vmatpush1.msra.mxu0 0.0
    %915 = vmatprep.subr.mxu0 0.0
    %916 = vmatpush1.msra.mxu0 0.0
    %917 = vmatprep.subr.mxu0 0.0
    %918 = vmatpush1.msra.mxu0 0.0
    %919 = vmatprep.subr.mxu0 0.0
    %920 = vmatpush1.msra.mxu0 0.0
    %921 = vmatprep.subr.mxu0 0.0
    %922 = vmatpush1.msra.mxu0 0.0
    %923 = vmatprep.subr.mxu0 0.0
    %924 = vmatpush1.msra.mxu0 0.0
    %925 = vmatprep.subr.mxu0 0.0
    %926 = vmatpush1.msra.mxu0 0.0
    %927 = vmatprep.subr.mxu0 0.0
    %928 = vmatpush1.msra.mxu0 0.0
    %929 = vmatprep.subr.mxu0 0.0
    %930 = vmatpush1.msra.mxu0 0.0
    %931 = vmatprep.subr.mxu0 0.0
    %932 = vmatpush1.msra.mxu0 0.0
    %933 = vmatprep.subr.mxu0 0.0
    %934 = vmatpush1.msra.mxu0 0.0
    %935 = vmatprep.subr.mxu0 0.0
    %936 = vmatpush1.msra.mxu0 0.0
    %937 = vmatprep.subr.mxu0 0.0
    %938 = vmatpush1.msra.mxu0 0.0
    %939 = vmatprep.subr.mxu0 0.0
    %940 = vmatpush1.msra.mxu0 0.0
    %941 = vmatprep.mubr.f32.mxu0 0.0
    %v942 = vand.u32 %v375, 4294901760
    %v943 = vsub.f32 %v375, %v942
    %v944 = vand.u32 %v943, 4294901760
    %945 = vmatmul.mubr.f32.gmra.mrb[0].mxu0 %v944
    %v946 = vpop.f32.mrb[0].mxu0
    %v947 = vadd.f32 %v818, %v946
    %v948 = vpop.f32.mrb[0].mxu0
    %949 = vmatprep.mubr.f32.mxu0 0.0
    %v950 = vand.u32 %v378, 4294901760
    %v951 = vsub.f32 %v378, %v950
    %v952 = vand.u32 %v951, 4294901760
    %953 = vmatmul.mubr.f32.gmra.mrb[0].mxu0 %v952
    %v954 = vpop.f32.mrb[0].mxu0
    %v955 = vadd.f32 %v825, %v954
    %v956 = vpop.f32.mrb[0].mxu0
    %957 = vmatprep.mubr.f32.mxu0 0.0
    %v958 = vand.u32 %v381, 4294901760
    %v959 = vsub.f32 %v381, %v958
    %v960 = vand.u32 %v959, 4294901760
    %961 = vmatmul.mubr.f32.gmra.mrb[0].mxu0 %v960
    %v962 = vpop.f32.mrb[0].mxu0
    %v963 = vadd.f32 %v832, %v962
    %v964 = vpop.f32.mrb[0].mxu0
    %965 = vmatprep.mubr.f32.mxu0 0.0
    %v966 = vand.u32 %v384, 4294901760
    %v967 = vsub.f32 %v384, %v966
    %v968 = vand.u32 %v967, 4294901760
    %969 = vmatmul.mubr.f32.gmra.mrb[0].mxu0 %v968
    %v970 = vpop.f32.mrb[0].mxu0
    %v971 = vadd.f32 %v839, %v970
    %v972 = vpop.f32.mrb[0].mxu0
    %973 = vmatprep.mubr.f32.mxu0 0.0
    %v974 = vand.u32 %v387, 4294901760
    %v975 = vsub.f32 %v387, %v974
    %v976 = vand.u32 %v975, 4294901760
    %977 = vmatmul.mubr.f32.gmra.mrb[0].mxu0 %v976
    %v978 = vpop.f32.mrb[0].mxu0
    %v979 = vadd.f32 %v846, %v978
    %v980 = vpop.f32.mrb[0].mxu0
    %981 = vmatprep.mubr.f32.mxu0 0.0
    %v982 = vand.u32 %v390, 4294901760
    %v983 = vsub.f32 %v390, %v982
    %v984 = vand.u32 %v983, 4294901760
    %985 = vmatmul.mubr.f32.gmra.mrb[0].mxu0 %v984
    %v986 = vpop.f32.mrb[0].mxu0
    %v987 = vadd.f32 %v853, %v986
    %v988 = vpop.f32.mrb[0].mxu0
    %989 = vmatprep.mubr.f32.mxu0 0.0
    %v990 = vand.u32 %v393, 4294901760
    %v991 = vsub.f32 %v393, %v990
    %v992 = vand.u32 %v991, 4294901760
    %993 = vmatmul.mubr.f32.gmra.mrb[0].mxu0 %v992
    %v994 = vpop.f32.mrb[0].mxu0
    %v995 = vadd.f32 %v860, %v994
    %v996 = vpop.f32.mrb[0].mxu0
    %997 = vdwg.mxu0
    %998 = vmatprep.subr.mxu0 0.0
    %v999 = vand.u32 %v310, 4294901760
    %v1000 = vsub.f32 %v310, %v999
    %v1001 = vand.u32 %v1000, 4294901760
    %1002 = vmatpush1.msra.mxu0 %v1001
    %1003 = vmatprep.subr.mxu0 0.0
    %v1004 = vand.u32 %v311, 4294901760
    %v1005 = vsub.f32 %v311, %v1004
    %v1006 = vand.u32 %v1005, 4294901760
    %1007 = vmatpush1.msra.mxu0 %v1006
    %1008 = vmatprep.subr.mxu0 0.0
    %v1009 = vand.u32 %v312, 4294901760
    %v1010 = vsub.f32 %v312, %v1009
    %v1011 = vand.u32 %v1010, 4294901760
    %1012 = vmatpush1.msra.mxu0 %v1011
    %1013 = vmatprep.subr.mxu0 0.0
    %v1014 = vand.u32 %v313, 4294901760
    %v1015 = vsub.f32 %v313, %v1014
    %v1016 = vand.u32 %v1015, 4294901760
    %1017 = vmatpush1.msra.mxu0 %v1016
    %1018 = vmatprep.subr.mxu0 0.0
    %v1019 = vand.u32 %v314, 4294901760
    %v1020 = vsub.f32 %v314, %v1019
    %v1021 = vand.u32 %v1020, 4294901760
    %1022 = vmatpush1.msra.mxu0 %v1021
    %1023 = vmatprep.subr.mxu0 0.0
    %v1024 = vand.u32 %v315, 4294901760
    %v1025 = vsub.f32 %v315, %v1024
    %v1026 = vand.u32 %v1025, 4294901760
    %1027 = vmatpush1.msra.mxu0 %v1026
    %1028 = vmatprep.subr.mxu0 0.0
    %v1029 = vand.u32 %v316, 4294901760
    %v1030 = vsub.f32 %v316, %v1029
    %v1031 = vand.u32 %v1030, 4294901760
    %1032 = vmatpush1.msra.mxu0 %v1031
    %1033 = vmatprep.subr.mxu0 0.0
    %v1034 = vand.u32 %v317, 4294901760
    %v1035 = vsub.f32 %v317, %v1034
    %v1036 = vand.u32 %v1035, 4294901760
    %1037 = vmatpush1.msra.mxu0 %v1036
    %1038 = vmatprep.subr.mxu0 0.0
    %v1039 = vand.u32 %v318, 4294901760
    %v1040 = vsub.f32 %v318, %v1039
    %v1041 = vand.u32 %v1040, 4294901760
    %1042 = vmatpush1.msra.mxu0 %v1041
    %1043 = vmatprep.subr.mxu0 0.0
    %v1044 = vand.u32 %v319, 4294901760
    %v1045 = vsub.f32 %v319, %v1044
    %v1046 = vand.u32 %v1045, 4294901760
    %1047 = vmatpush1.msra.mxu0 %v1046
    %1048 = vmatprep.subr.mxu0 0.0
    %v1049 = vand.u32 %v320, 4294901760
    %v1050 = vsub.f32 %v320, %v1049
    %v1051 = vand.u32 %v1050, 4294901760
    %1052 = vmatpush1.msra.mxu0 %v1051
    %1053 = vmatprep.subr.mxu0 0.0
    %v1054 = vand.u32 %v321, 4294901760
    %v1055 = vsub.f32 %v321, %v1054
    %v1056 = vand.u32 %v1055, 4294901760
    %1057 = vmatpush1.msra.mxu0 %v1056
    %1058 = vmatprep.subr.mxu0 0.0
    %v1059 = vand.u32 %v322, 4294901760
    %v1060 = vsub.f32 %v322, %v1059
    %v1061 = vand.u32 %v1060, 4294901760
    %1062 = vmatpush1.msra.mxu0 %v1061
    %1063 = vmatprep.subr.mxu0 0.0
    %v1064 = vand.u32 %v323, 4294901760
    %v1065 = vsub.f32 %v323, %v1064
    %v1066 = vand.u32 %v1065, 4294901760
    %1067 = vmatpush1.msra.mxu0 %v1066
    %1068 = vmatprep.subr.mxu0 0.0
    %1069 = vmatpush1.msra.mxu0 0.0
    %1070 = vmatprep.subr.mxu0 0.0
    %1071 = vmatpush1.msra.mxu0 0.0
    %1072 = vmatprep.subr.mxu0 0.0
    %1073 = vmatpush1.msra.mxu0 0.0
    %1074 = vmatprep.subr.mxu0 0.0
    %1075 = vmatpush1.msra.mxu0 0.0
    %1076 = vmatprep.subr.mxu0 0.0
    %1077 = vmatpush1.msra.mxu0 0.0
    %1078 = vmatprep.subr.mxu0 0.0
    %1079 = vmatpush1.msra.mxu0 0.0
    %1080 = vmatprep.subr.mxu0 0.0
    %1081 = vmatpush1.msra.mxu0 0.0
    %1082 = vmatprep.subr.mxu0 0.0
    %1083 = vmatpush1.msra.mxu0 0.0
    %1084 = vmatprep.subr.mxu0 0.0
    %1085 = vmatpush1.msra.mxu0 0.0
    %1086 = vmatprep.subr.mxu0 0.0
    %1087 = vmatpush1.msra.mxu0 0.0
    %1088 = vmatprep.subr.mxu0 0.0
    %1089 = vmatpush1.msra.mxu0 0.0
    %1090 = vmatprep.subr.mxu0 0.0
    %1091 = vmatpush1.msra.mxu0 0.0
    %1092 = vmatprep.subr.mxu0 0.0
    %1093 = vmatpush1.msra.mxu0 0.0
    %1094 = vmatprep.subr.mxu0 0.0
    %1095 = vmatpush1.msra.mxu0 0.0
    %1096 = vmatprep.subr.mxu0 0.0
    %1097 = vmatpush1.msra.mxu0 0.0
    %1098 = vmatprep.subr.mxu0 0.0
    %1099 = vmatpush1.msra.mxu0 0.0
    %1100 = vmatprep.subr.mxu0 0.0
    %1101 = vmatpush1.msra.mxu0 0.0
    %1102 = vmatprep.subr.mxu0 0.0
    %1103 = vmatpush1.msra.mxu0 0.0
    %1104 = vmatprep.mubr.f32.mxu0 0.0
    %v1105 = vand.u32 %v375, 4294901760
    %1106 = vmatmul.mubr.f32.gmra.mrb[0].mxu0 %v1105
    %v1107 = vpop.f32.mrb[0].mxu0
    %v1108 = vadd.f32 %v947, %v1107
    %v1109 = vpop.f32.mrb[0].mxu0
    %1110 = vmatprep.mubr.f32.mxu0 0.0
    %v1111 = vand.u32 %v378, 4294901760
    %1112 = vmatmul.mubr.f32.gmra.mrb[0].mxu0 %v1111
    %v1113 = vpop.f32.mrb[0].mxu0
    %v1114 = vadd.f32 %v955, %v1113
    %v1115 = vpop.f32.mrb[0].mxu0
    %1116 = vmatprep.mubr.f32.mxu0 0.0
    %v1117 = vand.u32 %v381, 4294901760
    %1118 = vmatmul.mubr.f32.gmra.mrb[0].mxu0 %v1117
    %v1119 = vpop.f32.mrb[0].mxu0
    %v1120 = vadd.f32 %v963, %v1119
    %v1121 = vpop.f32.mrb[0].mxu0
    %1122 = vmatprep.mubr.f32.mxu0 0.0
    %v1123 = vand.u32 %v384, 4294901760
    %1124 = vmatmul.mubr.f32.gmra.mrb[0].mxu0 %v1123
    %v1125 = vpop.f32.mrb[0].mxu0
    %v1126 = vadd.f32 %v971, %v1125
    %v1127 = vpop.f32.mrb[0].mxu0
    %1128 = vmatprep.mubr.f32.mxu0 0.0
    %v1129 = vand.u32 %v387, 4294901760
    %1130 = vmatmul.mubr.f32.gmra.mrb[0].mxu0 %v1129
    %v1131 = vpop.f32.mrb[0].mxu0
    %v1132 = vadd.f32 %v979, %v1131
    %v1133 = vpop.f32.mrb[0].mxu0
    %1134 = vmatprep.mubr.f32.mxu0 0.0
    %v1135 = vand.u32 %v390, 4294901760
    %1136 = vmatmul.mubr.f32.gmra.mrb[0].mxu0 %v1135
    %v1137 = vpop.f32.mrb[0].mxu0
    %v1138 = vadd.f32 %v987, %v1137
    %v1139 = vpop.f32.mrb[0].mxu0
    %1140 = vmatprep.mubr.f32.mxu0 0.0
    %v1141 = vand.u32 %v393, 4294901760
    %1142 = vmatmul.mubr.f32.gmra.mrb[0].mxu0 %v1141
    %v1143 = vpop.f32.mrb[0].mxu0
    %v1144 = vadd.f32 %v995, %v1143
    %v1145 = vpop.f32.mrb[0].mxu0
    %1146 = vdwg.mxu0
    %1147 = vmatprep.subr.mxu0 0.0
    %v1148 = vand.u32 %v310, 4294901760
    %1149 = vmatpush1.msra.mxu0 %v1148
    %1150 = vmatprep.subr.mxu0 0.0
    %v1151 = vand.u32 %v311, 4294901760
    %1152 = vmatpush1.msra.mxu0 %v1151
    %1153 = vmatprep.subr.mxu0 0.0
    %v1154 = vand.u32 %v312, 4294901760
    %1155 = vmatpush1.msra.mxu0 %v1154
    %1156 = vmatprep.subr.mxu0 0.0
    %v1157 = vand.u32 %v313, 4294901760
    %1158 = vmatpush1.msra.mxu0 %v1157
    %1159 = vmatprep.subr.mxu0 0.0
    %v1160 = vand.u32 %v314, 4294901760
    %1161 = vmatpush1.msra.mxu0 %v1160
    %1162 = vmatprep.subr.mxu0 0.0
    %v1163 = vand.u32 %v315, 4294901760
    %1164 = vmatpush1.msra.mxu0 %v1163
    %1165 = vmatprep.subr.mxu0 0.0
    %v1166 = vand.u32 %v316, 4294901760
    %1167 = vmatpush1.msra.mxu0 %v1166
    %1168 = vmatprep.subr.mxu0 0.0
    %v1169 = vand.u32 %v317, 4294901760
    %1170 = vmatpush1.msra.mxu0 %v1169
    %1171 = vmatprep.subr.mxu0 0.0
    %v1172 = vand.u32 %v318, 4294901760
    %1173 = vmatpush1.msra.mxu0 %v1172
    %1174 = vmatprep.subr.mxu0 0.0
    %v1175 = vand.u32 %v319, 4294901760
    %1176 = vmatpush1.msra.mxu0 %v1175
    %1177 = vmatprep.subr.mxu0 0.0
    %v1178 = vand.u32 %v320, 4294901760
    %1179 = vmatpush1.msra.mxu0 %v1178
    %1180 = vmatprep.subr.mxu0 0.0
    %v1181 = vand.u32 %v321, 4294901760
    %1182 = vmatpush1.msra.mxu0 %v1181
    %1183 = vmatprep.subr.mxu0 0.0
    %v1184 = vand.u32 %v322, 4294901760
    %1185 = vmatpush1.msra.mxu0 %v1184
    %1186 = vmatprep.subr.mxu0 0.0
    %v1187 = vand.u32 %v323, 4294901760
    %1188 = vmatpush1.msra.mxu0 %v1187
    %1189 = vmatprep.subr.mxu0 0.0
    %1190 = vmatpush1.msra.mxu0 0.0
    %1191 = vmatprep.subr.mxu0 0.0
    %1192 = vmatpush1.msra.mxu0 0.0
    %1193 = vmatprep.subr.mxu0 0.0
    %1194 = vmatpush1.msra.mxu0 0.0
    %1195 = vmatprep.subr.mxu0 0.0
    %1196 = vmatpush1.msra.mxu0 0.0
    %1197 = vmatprep.subr.mxu0 0.0
    %1198 = vmatpush1.msra.mxu0 0.0
    %1199 = vmatprep.subr.mxu0 0.0
    %1200 = vmatpush1.msra.mxu0 0.0
    %1201 = vmatprep.subr.mxu0 0.0
    %1202 = vmatpush1.msra.mxu0 0.0
    %1203 = vmatprep.subr.mxu0 0.0
    %1204 = vmatpush1.msra.mxu0 0.0
    %1205 = vmatprep.subr.mxu0 0.0
    %1206 = vmatpush1.msra.mxu0 0.0
    %1207 = vmatprep.subr.mxu0 0.0
    %1208 = vmatpush1.msra.mxu0 0.0
    %1209 = vmatprep.subr.mxu0 0.0
    %1210 = vmatpush1.msra.mxu0 0.0
    %1211 = vmatprep.subr.mxu0 0.0
    %1212 = vmatpush1.msra.mxu0 0.0
    %1213 = vmatprep.subr.mxu0 0.0
    %1214 = vmatpush1.msra.mxu0 0.0
    %1215 = vmatprep.subr.mxu0 0.0
    %1216 = vmatpush1.msra.mxu0 0.0
    %1217 = vmatprep.subr.mxu0 0.0
    %1218 = vmatpush1.msra.mxu0 0.0
    %1219 = vmatprep.subr.mxu0 0.0
    %1220 = vmatpush1.msra.mxu0 0.0
    %1221 = vmatprep.subr.mxu0 0.0
    %1222 = vmatpush1.msra.mxu0 0.0
    %1223 = vmatprep.subr.mxu0 0.0
    %1224 = vmatpush1.msra.mxu0 0.0
    %1225 = vmatprep.mubr.f32.mxu0 0.0
    %v1226 = vand.u32 %v375, 4294901760
    %1227 = vmatmul.mubr.f32.gmra.mrb[0].mxu0 %v1226
    %v1228 = vpop.f32.mrb[0].mxu0
    %v1229 = vadd.f32 %v1108, %v1228
    %v1230 = vpop.f32.mrb[0].mxu0
    %1231 = vmatprep.mubr.f32.mxu0 0.0
    %v1232 = vand.u32 %v378, 4294901760
    %1233 = vmatmul.mubr.f32.gmra.mrb[0].mxu0 %v1232
    %v1234 = vpop.f32.mrb[0].mxu0
    %v1235 = vadd.f32 %v1114, %v1234
    %v1236 = vpop.f32.mrb[0].mxu0
    %1237 = vmatprep.mubr.f32.mxu0 0.0
    %v1238 = vand.u32 %v381, 4294901760
    %1239 = vmatmul.mubr.f32.gmra.mrb[0].mxu0 %v1238
    %v1240 = vpop.f32.mrb[0].mxu0
    %v1241 = vadd.f32 %v1120, %v1240
    %v1242 = vpop.f32.mrb[0].mxu0
    %1243 = vmatprep.mubr.f32.mxu0 0.0
    %v1244 = vand.u32 %v384, 4294901760
    %1245 = vmatmul.mubr.f32.gmra.mrb[0].mxu0 %v1244
    %v1246 = vpop.f32.mrb[0].mxu0
    %v1247 = vadd.f32 %v1126, %v1246
    %v1248 = vpop.f32.mrb[0].mxu0
    %1249 = vmatprep.mubr.f32.mxu0 0.0
    %v1250 = vand.u32 %v387, 4294901760
    %1251 = vmatmul.mubr.f32.gmra.mrb[0].mxu0 %v1250
    %v1252 = vpop.f32.mrb[0].mxu0
    %v1253 = vadd.f32 %v1132, %v1252
    %v1254 = vpop.f32.mrb[0].mxu0
    %1255 = vmatprep.mubr.f32.mxu0 0.0
    %v1256 = vand.u32 %v390, 4294901760
    %1257 = vmatmul.mubr.f32.gmra.mrb[0].mxu0 %v1256
    %v1258 = vpop.f32.mrb[0].mxu0
    %v1259 = vadd.f32 %v1138, %v1258
    %v1260 = vpop.f32.mrb[0].mxu0
    %1261 = vmatprep.mubr.f32.mxu0 0.0
    %v1262 = vand.u32 %v393, 4294901760
    %1263 = vmatmul.mubr.f32.gmra.mrb[0].mxu0 %v1262
    %v1264 = vpop.f32.mrb[0].mxu0
    %v1265 = vadd.f32 %v1144, %v1264
    %v1266 = vpop.f32.mrb[0].mxu0
    %1267 = vdwg.mxu0
    %vm1268 = vcmask 58368
    %v1269 = vsel %vm1268, %v1229, -inf
    %v1270 = vrot.slane %v1269, 4
    %v1271 = vmax.f32 %v1269, %v1270
    %v1272 = vrot.slane %v1271, 2
    %v1273 = vmax.f32 %v1271, %v1272
    %v1274 = vrot.slane %v1273, 1
    %v1275 = vmax.f32 %v1273, %v1274
    %v1276 = vsub.f32 %v1229, %v1275
    %v1277 = vmul.f32 %v1276, 1.442695
    %v1278 = vpow.pop %v1277
    %v1279 = vsel %vm1268, %v1278, 0.0
    %v1280 = vrot.slane %v1279, 4
    %v1281 = vadd.f32 %v1279, %v1280
    %v1282 = vrot.slane %v1281, 2
    %v1283 = vadd.f32 %v1281, %v1282
    %v1284 = vrot.slane %v1283, 1
    %v1285 = vadd.f32 %v1283, %v1284
    %v1286 = vrcp.pop %v1285
    %v1287 = vmul.f32 %v1278, %v1286
    %v1288 = vsel %vm1268, %v1235, -inf
    %v1289 = vrot.slane %v1288, 4
    %v1290 = vmax.f32 %v1288, %v1289
    %v1291 = vrot.slane %v1290, 2
    %v1292 = vmax.f32 %v1290, %v1291
    %v1293 = vrot.slane %v1292, 1
    %v1294 = vmax.f32 %v1292, %v1293
    %v1295 = vsub.f32 %v1235, %v1294
    %v1296 = vmul.f32 %v1295, 1.442695
    %v1297 = vpow.pop %v1296
    %v1298 = vsel %vm1268, %v1297, 0.0
    %v1299 = vrot.slane %v1298, 4
    %v1300 = vadd.f32 %v1298, %v1299
    %v1301 = vrot.slane %v1300, 2
    %v1302 = vadd.f32 %v1300, %v1301
    %v1303 = vrot.slane %v1302, 1
    %v1304 = vadd.f32 %v1302, %v1303
    %v1305 = vrcp.pop %v1304
    %v1306 = vmul.f32 %v1297, %v1305
    %v1307 = vsel %vm1268, %v1241, -inf
    %v1308 = vrot.slane %v1307, 4
    %v1309 = vmax.f32 %v1307, %v1308
    %v1310 = vrot.slane %v1309, 2
    %v1311 = vmax.f32 %v1309, %v1310
    %v1312 = vrot.slane %v1311, 1
    %v1313 = vmax.f32 %v1311, %v1312
    %v1314 = vsub.f32 %v1241, %v1313
    %v1315 = vmul.f32 %v1314, 1.442695
    %v1316 = vpow.pop %v1315
    %v1317 = vsel %vm1268, %v1316, 0.0
    %v1318 = vrot.slane %v1317, 4
    %v1319 = vadd.f32 %v1317, %v1318
    %v1320 = vrot.slane %v1319, 2
    %v1321 = vadd.f32 %v1319, %v1320
    %v1322 = vrot.slane %v1321, 1
    %v1323 = vadd.f32 %v1321, %v1322
    %v1324 = vrcp.pop %v1323
    %v1325 = vmul.f32 %v1316, %v1324
    %v1326 = vsel %vm1268, %v1247, -inf
    %v1327 = vrot.slane %v1326, 4
    %v1328 = vmax.f32 %v1326, %v1327
    %v1329 = vrot.slane %v1328, 2
    %v1330 = vmax.f32 %v1328, %v1329
    %v1331 = vrot.slane %v1330, 1
    %v1332 = vmax.f32 %v1330, %v1331
    %v1333 = vsub.f32 %v1247, %v1332
    %v1334 = vmul.f32 %v1333, 1.442695
    %v1335 = vpow.pop %v1334
    %v1336 = vsel %vm1268, %v1335, 0.0
    %v1337 = vrot.slane %v1336, 4
    %v1338 = vadd.f32 %v1336, %v1337
    %v1339 = vrot.slane %v1338, 2
    %v1340 = vadd.f32 %v1338, %v1339
    %v1341 = vrot.slane %v1340, 1
    %v1342 = vadd.f32 %v1340, %v1341
    %v1343 = vrcp.pop %v1342
    %v1344 = vmul.f32 %v1335, %v1343
    %v1345 = vsel %vm1268, %v1253, -inf
    %v1346 = vrot.slane %v1345, 4
    %v1347 = vmax.f32 %v1345, %v1346
    %v1348 = vrot.slane %v1347, 2
    %v1349 = vmax.f32 %v1347, %v1348
    %v1350 = vrot.slane %v1349, 1
    %v1351 = vmax.f32 %v1349, %v1350
    %v1352 = vsub.f32 %v1253, %v1351
    %v1353 = vmul.f32 %v1352, 1.442695
    %v1354 = vpow.pop %v1353
    %v1355 = vsel %vm1268, %v1354, 0.0
    %v1356 = vrot.slane %v1355, 4
    %v1357 = vadd.f32 %v1355, %v1356
    %v1358 = vrot.slane %v1357, 2
    %v1359 = vadd.f32 %v1357, %v1358
    %v1360 = vrot.slane %v1359, 1
    %v1361 = vadd.f32 %v1359, %v1360
    %v1362 = vrcp.pop %v1361
    %v1363 = vmul.f32 %v1354, %v1362
    %v1364 = vsel %vm1268, %v1259, -inf
    %v1365 = vrot.slane %v1364, 4
    %v1366 = vmax.f32 %v1364, %v1365
    %v1367 = vrot.slane %v1366, 2
    %v1368 = vmax.f32 %v1366, %v1367
    %v1369 = vrot.slane %v1368, 1
    %v1370 = vmax.f32 %v1368, %v1369
    %v1371 = vsub.f32 %v1259, %v1370
    %v1372 = vmul.f32 %v1371, 1.442695
    %v1373 = vpow.pop %v1372
    %v1374 = vsel %vm1268, %v1373, 0.0
    %v1375 = vrot.slane %v1374, 4
    %v1376 = vadd.f32 %v1374, %v1375
    %v1377 = vrot.slane %v1376, 2
    %v1378 = vadd.f32 %v1376, %v1377
    %v1379 = vrot.slane %v1378, 1
    %v1380 = vadd.f32 %v1378, %v1379
    %v1381 = vrcp.pop %v1380
    %v1382 = vmul.f32 %v1373, %v1381
    %v1383 = vsel %vm1268, %v1265, -inf
    %v1384 = vrot.slane %v1383, 4
    %v1385 = vmax.f32 %v1383, %v1384
    %v1386 = vrot.slane %v1385, 2
    %v1387 = vmax.f32 %v1385, %v1386
    %v1388 = vrot.slane %v1387, 1
    %v1389 = vmax.f32 %v1387, %v1388
    %v1390 = vsub.f32 %v1265, %v1389
    %v1391 = vmul.f32 %v1390, 1.442695
    %v1392 = vpow.pop %v1391
    %v1393 = vsel %vm1268, %v1392, 0.0
    %v1394 = vrot.slane %v1393, 4
    %v1395 = vadd.f32 %v1393, %v1394
    %v1396 = vrot.slane %v1395, 2
    %v1397 = vadd.f32 %v1395, %v1396
    %v1398 = vrot.slane %v1397, 1
    %v1399 = vadd.f32 %v1397, %v1398
    %v1400 = vrcp.pop %v1399
    %v1401 = vmul.f32 %v1392, %v1400
    %v1402 = vlaneseq
    %v1403 = vshrl.u32 %v1402, 7
    %v1404 = vsub.s32 0, %v1403
    %v1405 = vrot.slane %v1306, %v1404
    %v1406 = vmul.f32 %v1405, %v1344
    %v1407 = vlaneseq
    %v1408 = vshrl.u32 %v1407, 7
    %v1409 = vsub.s32 1, %v1408
    %v1410 = vrot.slane %v1306, %v1409
    %v1411 = vmul.f32 %v1410, %v1363
    %v1412 = vadd.f32 %v1406, %v1411
    %v1413 = vlaneseq
    %v1414 = vshrl.u32 %v1413, 7
    %v1415 = vsub.s32 0, %v1414
    %v1416 = vrot.slane %v1325, %v1415
    %v1417 = vmul.f32 %v1416, %v1382
    %v1418 = vlaneseq
    %v1419 = vshrl.u32 %v1418, 7
    %v1420 = vsub.s32 1, %v1419
    %v1421 = vrot.slane %v1325, %v1420
    %v1422 = vmul.f32 %v1421, %v1401
    %v1423 = vadd.f32 %v1417, %v1422
    %v1424 = vlaneseq
    %v1425 = vshrl.u32 %v1424, 7
    %v1426 = vsub.s32 0, %v1425
    %v1427 = vrot.slane %v1287, %v1426
    %v1428 = vmul.f32 %v1427, %v1412
    %v1429 = vlaneseq
    %v1430 = vshrl.u32 %v1429, 7
    %v1431 = vsub.s32 1, %v1430
    %v1432 = vrot.slane %v1287, %v1431
    %v1433 = vmul.f32 %v1432, %v1423
    %v1434 = vadd.f32 %v1428, %v1433
    %1435 = vst.msk [vmem:[#allocation2] sm:$0x3] %vm1268, %v1434
    // Predicated region
    $region22: #{tpu_custom_call.1} parent=1 // pred_check
      _
    $region23: #{tpu_custom_call.1} parent=1 // pred_check_branch
      %1437 = sbr.rel (0) target = $region25
    $region24: #{tpu_custom_call.1} parent=1 // pred_region
      %s1439 = ssub.s32 32, 32
      %1440 = vsyncadd [#allocation3], %s1439
      %s1442 = sshll.u32 [#allocation2], 4
      %s1443 = int_to_ptr.vmem [resolvable:$true] %s1442
      %1445 = dma.vmem_to_hbm [thread:$0]  %s1443, 32, %s5, [#allocation3]
    $region25: #{tpu_custom_call.1} parent=1 // pred_fallthru
      _
    // Predicated region
    $region26: #{tpu_custom_call.1} parent=1 // pred_check
      _
    $region27: #{tpu_custom_call.1} parent=1 // pred_check_branch
      %1447 = sbr.rel (0) target = $region29
    $region28: #{tpu_custom_call.1} parent=1 // pred_region
      %1448 = dma.done [#allocation3], 32
    $region29: #{tpu_custom_call.1} parent=1 // pred_fallthru
      _
    %1449 = vsyncpa [#allocation3], 1

</llo_original>
